<compile_context>
chip_gen: v7x
topology: tpu7x:2x2x1
jax: 0.10.0
libtpu: 0.0.40
codegen_flags: <defaults>
</compile_context>

<pallas_src>
import functools

import jax
import jax.numpy as jnp
from jax import lax
from jax.experimental import pallas as pl
from jax.experimental.pallas import tpu as pltpu


def _round_up(x, m):
  return ((x + m - 1) // m) * m


# ----------------------------------------------------------------------------
# Kernel 1: prologue — input_proj + LayerNorm + L-layer recurrence + state mix
# ----------------------------------------------------------------------------
def _prologue_kernel(
    obs_ref,     # (tb, E_pad)      f32  VMEM : mean-pooled embeddings (batch tile)
    w_in_ref,    # (E_pad, H_pad)   f32  VMEM : input_proj weight (in, out)
    b_in_ref,    # (1, H_pad)       f32  VMEM
    ln_g_ref,    # (1, H_pad)       f32  VMEM : LayerNorm gamma (zero in padded cols)
    ln_b_ref,    # (1, H_pad)       f32  VMEM : LayerNorm beta  (zero in padded cols)
    enc_ref,     # (5, L)           f32  SMEM : [fuA*s, (fuA+fuB)*s, lam, eta, zeta]
    sm_ref,      # (5, 5)           f32  SMEM : state_matrix
    v_ref,       # (tb, H_pad)      bf16 out  : prediction vector V
    state_ref,   # (tb, 5, H_pad)   f32  out  : processed state, API layout
    *,
    num_layers: int,
    hidden_size: int,
):
  tb, h_pad = v_ref.shape
  # lane mask over real (unpadded) hidden features
  mask = (lax.broadcasted_iota(jnp.int32, (1, h_pad), 1)
          < hidden_size).astype(jnp.float32)

  # input_proj: Linear(E->H) + LayerNorm(H)   (padded cols of `hidden` are exactly 0)
  hidden = jnp.dot(obs_ref[...], w_in_ref[...],
                   preferred_element_type=jnp.float32) + b_in_ref[...]
  inv_h = 1.0 / hidden_size
  mu = jnp.sum(hidden, axis=-1, keepdims=True) * inv_h
  centered = (hidden - mu) * mask
  var = jnp.sum(centered * centered, axis=-1, keepdims=True) * inv_h
  h_n = (hidden - mu) * lax.rsqrt(var + 1e-5)
  h_n = h_n * ln_g_ref[...] + ln_b_ref[...]            # padded cols stay 0

  # Layer stack (BasePairEncoder recurrence), reduced using the invariants
  # p_B == -p_A and x_B == x_A - d (all registers except x_A start at 0).
  x_a = h_n                                            # x_A
  d = h_n                                              # x_A - x_B
  p = jnp.zeros_like(h_n)                              # p_A
  x0 = jnp.zeros((tb, 1), jnp.float32)                 # x0 (uniform along H)

  def _step(l_idx, x_a, d, p, x0):
    a = enc_ref[0, l_idx]        # fu_A * sin(omega*t_l + phi)
    c = enc_ref[1, l_idx]        # (fu_A + fu_B) * sin(omega*t_l + phi)
    lam = enc_ref[2, l_idx]
    eta = enc_ref[3, l_idx]
    zeta = enc_ref[4, l_idx]
    t1 = p - d
    x_a = x_a + a * mask + lam * t1                    # new x_A
    d = d + c * mask + (2.0 * lam) * t1                # new x_A - new x_B
    p = p - eta * d                                    # new p_A
    nrm = jnp.sqrt(jnp.sum(d * d, axis=-1, keepdims=True))
    x0 = x0 + zeta * (nrm - x0)
    return x_a, d, p, x0

  if num_layers <= 8:            # small L: full unroll (cheap, best scheduling)
    for l in range(num_layers):
      x_a, d, p, x0 = _step(l, x_a, d, p, x0)
  else:                          # large L: bound live ranges with fori_loop
    def _body(l, carry):
      return _step(l, *carry)
    x_a, d, p, x0 = lax.fori_loop(0, num_layers, _body, (x_a, d, p, x0))

  x0_b = x0 * mask                                     # broadcast; padded cols zero

  # process_state_as_matrix: proc_i = sum_j SM[i,j] * state_j with
  # state = (x_A, x_B, p_A, p_B, x0), x_B = x_A - d, p_B = -p_A.
  # Store directly in the (B, 5, H) API layout.
  proc = []
  for i in range(5):
    s0 = sm_ref[i, 0]; s1 = sm_ref[i, 1]; s2 = sm_ref[i, 2]
    s3 = sm_ref[i, 3]; s4 = sm_ref[i, 4]
    pi = (s0 + s1) * x_a - s1 * d + (s2 - s3) * p + s4 * x0_b
    state_ref[:, i, :] = pi
    proc.append(pi)
  px_a, px_b, pp_a, pp_b, px0 = proc

  # AutonomicInternalVectorPredictionLayer side selection (squared-norm compare
  # is monotone-equivalent to the reference norm compare).
  m_a = (px_a + pp_a) * 0.5
  m_b = (px_b + pp_b) * 0.5
  da2 = jnp.sum((m_a - px0) ** 2, axis=-1, keepdims=True)
  db2 = jnp.sum((m_b - px0) ** 2, axis=-1, keepdims=True)
  m_high = jnp.where(da2 > db2, m_a, m_b)
  v_ref[...] = (m_high - px0).astype(v_ref.dtype)


# ----------------------------------------------------------------------------
# Kernel 2: prediction matmul — pure (tb, H) x (H, tv) tile, bf16 MXU, f32 acc
# ----------------------------------------------------------------------------
def _predict_kernel(v_ref, w_pred_ref, b_pred_ref, logits_ref):
  logits_ref[...] = (
      jnp.dot(v_ref[...], w_pred_ref[...],
              preferred_element_type=jnp.float32) + b_pred_ref[...])


# ----------------------------------------------------------------------------
# Parameter construction (mirrors the nn.Module __init__ shapes; f32)
# ----------------------------------------------------------------------------
def init_params(key, vocab_size, embed_size, hidden_size, num_layers):
  ks = jax.random.split(key, 3)
  return dict(
      embedding=jax.random.normal(ks[0], (vocab_size, embed_size), jnp.float32) * 0.02,
      w_in=jax.random.normal(ks[1], (embed_size, hidden_size), jnp.float32)
           / jnp.sqrt(embed_size),
      b_in=jnp.zeros((1, hidden_size), jnp.float32),
      ln_gamma=jnp.ones((1, hidden_size), jnp.float32),
      ln_beta=jnp.zeros((1, hidden_size), jnp.float32),
      w_pred=jax.random.normal(ks[2], (hidden_size, vocab_size), jnp.float32)
             / jnp.sqrt(hidden_size),
      b_pred=jnp.zeros((1, vocab_size), jnp.float32),
      # per-layer BasePairEncoder scalars (same init as torch for every layer)
      fu_A=jnp.full((num_layers,), 0.1, jnp.float32),
      fu_B=jnp.full((num_layers,), -0.2, jnp.float32),
      lam=jnp.full((num_layers,), 0.05, jnp.float32),
      eta=jnp.full((num_layers,), 0.01, jnp.float32),
      zeta=jnp.full((num_layers,), 0.1, jnp.float32),
      omega=jnp.full((num_layers,), 1.0, jnp.float32),
      phi=jnp.full((num_layers,), 0.0, jnp.float32),
      state_matrix=jnp.eye(5, dtype=jnp.float32),
  )


# ----------------------------------------------------------------------------
# Wrapper: embedding gather + mean (glue), padding, tile sizing, two pallas_calls
# ----------------------------------------------------------------------------
def autonomic_forward(params, input_ids, *, num_layers, t_start=1.0, dt=1.0):
  # Embedding lookup + mean over sequence (gather glue, outside the kernel).
  emb = params["embedding"][input_ids]                       # (B, S, E)
  obs = jnp.mean(emb, axis=1).astype(jnp.float32)            # (B, E)

  B, E = obs.shape
  H = params["w_in"].shape[1]
  V = params["w_pred"].shape[1]
  L = num_layers

  E_pad = _round_up(E, 128)
  H_pad = _round_up(H, 128)

  # ---- generation-aware VMEM budget (64 MiB on v7x, 128 MiB on v5e/v6e) ----
  mib = 1024 * 1024
  try:
    vmem_cap = int(pltpu.get_tpu_info().vmem_capacity_bytes)
  except Exception:
    vmem_cap = 64 * mib                                       # conservative fallback
  vmem_limit = int(max(32 * mib, min(vmem_cap - 8 * mib, 110 * mib)))
  budget = int(vmem_limit * 0.85)                             # headroom for compiler scratch

  # ---- batch tile (shared by both kernels) ----
  tb = min(512, _round_up(B, 8))

  def _prologue_bytes(t):
    return (2 * E_pad * H_pad * 4          # w_in (default double-buffered)
            + 2 * t * E_pad * 4            # obs tile
            + 2 * t * 5 * H_pad * 4        # state output tile
            + 2 * t * H_pad * 2            # V output tile (bf16)
            + 20 * t * H_pad * 4)          # live f32 intermediates headroom

  while tb > 16 and _prologue_bytes(tb) > budget:
    tb = max(16, _round_up(tb // 2, 8))
  B_pad = _round_up(B, tb)

  # ---- vocab tile for the prediction matmul (fit double-buffered blocks) ----
  fixed = 2 * tb * H_pad * 2                        # V input (double-buffered bf16)
  per_tv = 2 * H_pad * 2 + 2 * tb * 4 + 2 * 4       # w_pred + logits + b_pred per column
  tv_cap = max(128, ((budget - fixed) // per_tv) // 128 * 128)
  tv = int(min(4096, tv_cap, _round_up(V, 128)))
  V_pad = _round_up(V, tv)
  nB = B_pad // tb
  nV = V_pad // tv

  def pad2(x, r, c):
    return jnp.pad(x, ((0, r - x.shape[0]), (0, c - x.shape[1])))

  obs_p = pad2(obs, B_pad, E_pad)
  w_in = pad2(params["w_in"].astype(jnp.float32), E_pad, H_pad)
  b_in = pad2(params["b_in"].astype(jnp.float32), 1, H_pad)
  ln_g = pad2(params["ln_gamma"].astype(jnp.float32), 1, H_pad)
  ln_b = pad2(params["ln_beta"].astype(jnp.float32), 1, H_pad)
  w_pred = pad2(params["w_pred"].astype(jnp.float32), H_pad, V_pad).astype(jnp.bfloat16)
  b_pred = pad2(params["b_pred"].astype(jnp.float32), 1, V_pad)

  # Per-layer encoder scalars, toggle=True path: t_l = t_start + l*dt.
  t = t_start + dt * jnp.arange(L, dtype=jnp.float32)
  s = jnp.sin(params["omega"] * t + params["phi"])
  enc = jnp.stack([params["fu_A"] * s,
                   (params["fu_A"] + params["fu_B"]) * s,
                   params["lam"], params["eta"], params["zeta"]],
                  axis=0).astype(jnp.float32)                # (5, L), long axis last
  sm = params["state_matrix"].astype(jnp.float32)            # (5, 5)

  smem = pltpu.MemorySpace.SMEM

  # ------------------- kernel 1: prologue (batch grid only) -------------------
  v_vec, state_p = pl.pallas_call(
      functools.partial(_prologue_kernel, num_layers=L, hidden_size=H),
      grid=(nB,),
      in_specs=[
          pl.BlockSpec((tb, E_pad), lambda i: (i, 0)),
          pl.BlockSpec((E_pad, H_pad), lambda i: (0, 0)),
          pl.BlockSpec((1, H_pad), lambda i: (0, 0)),
          pl.BlockSpec((1, H_pad), lambda i: (0, 0)),
          pl.BlockSpec((1, H_pad), lambda i: (0, 0)),
          pl.BlockSpec(memory_space=smem),
          pl.BlockSpec(memory_space=smem),
      ],
      out_specs=(
          pl.BlockSpec((tb, H_pad), lambda i: (i, 0)),
          pl.BlockSpec((tb, 5, H_pad), lambda i: (i, 0, 0)),
      ),
      out_shape=(
          jax.ShapeDtypeStruct((B_pad, H_pad), jnp.bfloat16),
          jax.ShapeDtypeStruct((B_pad, 5, H_pad), jnp.float32),
      ),
      compiler_params=pltpu.CompilerParams(
          dimension_semantics=("parallel",),
          vmem_limit_bytes=vmem_limit),
      cost_estimate=pl.CostEstimate(
          flops=2 * B_pad * E_pad * H_pad + (12 * L + 60) * B_pad * H_pad,
          transcendentals=(L + 1) * B_pad,
          bytes_accessed=(4 * (B_pad * E_pad + E_pad * H_pad + 3 * H_pad
                               + 5 * B_pad * H_pad)
                          + 2 * B_pad * H_pad + 4 * (5 * L + 25))),
  )(obs_p, w_in, b_in, ln_g, ln_b, enc, sm)

  # --------- kernel 2: prediction matmul (vocab outer, batch inner) -----------
  # w_pred block index is constant along the inner batch axis, so each vocab tile
  # of w_pred is streamed from HBM exactly once, regardless of the batch size.
  logits_p = pl.pallas_call(
      _predict_kernel,
      grid=(nV, nB),
      in_specs=[
          pl.BlockSpec((tb, H_pad), lambda j, i: (i, 0)),
          pl.BlockSpec((H_pad, tv), lambda j, i: (0, j)),
          pl.BlockSpec((1, tv), lambda j, i: (0, j)),
      ],
      out_specs=pl.BlockSpec((tb, tv), lambda j, i: (i, j)),
      out_shape=jax.ShapeDtypeStruct((B_pad, V_pad), jnp.float32),
      compiler_params=pltpu.CompilerParams(
          dimension_semantics=("parallel", "parallel"),
          vmem_limit_bytes=vmem_limit),
      cost_estimate=pl.CostEstimate(
          flops=2 * B_pad * H_pad * V_pad,
          transcendentals=0,
          bytes_accessed=(2 * H_pad * V_pad            # w_pred, streamed once
                          + 2 * B_pad * H_pad * nV     # V re-read per vocab tile
                          + 4 * B_pad * V_pad          # logits writeback
                          + 4 * V_pad)),               # b_pred
  )(v_vec, w_pred, b_pred)

  logits = logits_p[:B, :V]
  processed_state = state_p[:B, :, :H]                 # already (B, 5, H)
  return logits, processed_state


# ----------------------------------------------------------------------------
# Pure-JAX reference (f32) for a loose numerical sanity check.
# ----------------------------------------------------------------------------
def _reference_forward(params, input_ids, *, num_layers, t_start=1.0, dt=1.0):
  emb = params["embedding"][input_ids]
  obs = jnp.mean(emb, axis=1)
  h = obs @ params["w_in"] + params["b_in"]
  mu = jnp.mean(h, -1, keepdims=True)
  var = jnp.mean((h - mu) ** 2, -1, keepdims=True)
  h = (h - mu) / jnp.sqrt(var + 1e-5) * params["ln_gamma"] + params["ln_beta"]
  z = jnp.zeros_like(h)
  x_A, x_B, p_A, p_B, x0 = h, z, z, z, z
  t = t_start
  for l in range(num_layers):
    s = jnp.sin(params["omega"][l] * t + params["phi"][l])
    nx_A = x_A + params["fu_A"][l] * s + params["lam"][l] * (p_A - (x_A - x_B))
    nx_B = x_B - params["fu_B"][l] * s + params["lam"][l] * (p_B - (x_B - x_A))
    np_A = p_A + params["eta"][l] * (nx_B - nx_A)
    np_B = p_B + params["eta"][l] * (nx_A - nx_B)
    diff = jnp.linalg.norm(nx_A - nx_B, axis=-1, keepdims=True)
    nx0 = x0 + params["zeta"][l] * (diff - x0)
    x_A, x_B, p_A, p_B, x0 = nx_A, nx_B, np_A, np_B, nx0
    t = t + dt
  state = jnp.stack([x_A, x_B, p_A, p_B, x0], axis=1)
  proc = jnp.einsum("ij,bjk->bik", params["state_matrix"], state)
  px_A, px_B, pp_A, pp_B, px0 = [proc[:, i] for i in range(5)]
  M_A = (px_A + pp_A) * 0.5
  M_B = (px_B + pp_B) * 0.5
  d_A = jnp.linalg.norm(M_A - px0, axis=-1, keepdims=True)
  d_B = jnp.linalg.norm(M_B - px0, axis=-1, keepdims=True)
  M_high = jnp.where(d_A > d_B, M_A, M_B)
  logits = (M_high - px0) @ params["w_pred"] + params["b_pred"]
  return logits, proc


# TODO(synk): AutonomicAttentionBlock's attention-head / LayerNorm / FFN outputs are
# discarded by AutonomicLayerStack (only the encoder state propagates), so they are
# intentionally not implemented — they have no effect on the forward outputs.

if __name__ == "__main__":
  vocab_size = 64
  embed_size = 16
  hidden_size = 32
  num_layers = 3
  batch, seq = 2, 8

  key = jax.random.PRNGKey(0)
  pkey, ikey = jax.random.split(key)
  params = init_params(pkey, vocab_size, embed_size, hidden_size, num_layers)
  input_ids = jax.random.randint(ikey, (batch, seq), 0, vocab_size, dtype=jnp.int32)

  fwd = jax.jit(functools.partial(autonomic_forward, num_layers=num_layers))
  logits, processed_state = fwd(params, input_ids)
  jax.block_until_ready((logits, processed_state))

  assert logits.shape == (batch, vocab_size)
  assert processed_state.shape == (batch, 5, hidden_size)
  assert bool(jnp.all(jnp.isfinite(logits)))

  # Loose check vs a pure-JAX f32 reference (bf16 prediction-weight streaming allowed).
  ref_logits, ref_state = _reference_forward(params, input_ids, num_layers=num_layers)
  assert bool(jnp.allclose(processed_state, ref_state, rtol=5e-2, atol=5e-2))
  assert bool(jnp.allclose(logits, ref_logits, rtol=5e-2, atol=5e-2))

  print("KERNEL_OK")
</pallas_src>

<mosaic_0001>
module attributes {stable_mosaic.version = 11 : i64} {
  func.func @_predict_kernel(%arg0: i32, %arg1: i32, %arg2: memref<8x128xbf16, #tpu.memory_space<vmem>>, %arg3: memref<128x128xbf16, #tpu.memory_space<vmem>>, %arg4: memref<1x128xf32, #tpu.memory_space<vmem>>, %arg5: memref<8x128xf32, #tpu.memory_space<vmem>>) attributes {dimension_semantics = [#tpu.dimension_semantics<parallel>, #tpu.dimension_semantics<parallel>], iteration_bounds = array<i64: 1, 1>, scalar_prefetch = 0 : i64, scratch_operands = 0 : i64, tpu.core_type = #tpu.core_type<tc>, window_params = [{transform_indices = @transform_0, window_bounds = array<i64: 8, 128>}, {transform_indices = @transform_1, window_bounds = array<i64: 128, 128>}, {transform_indices = @transform_2, window_bounds = array<i64: 1, 128>}, {transform_indices = @transform_3, window_bounds = array<i64: 8, 128>}]} {
    %c0 = arith.constant 0 : index
    %c0_0 = arith.constant 0 : index
    %0 = vector.load %arg2[%c0, %c0_0] : memref<8x128xbf16, #tpu.memory_space<vmem>>, vector<8x128xbf16>
    %c0_1 = arith.constant 0 : index
    %c0_2 = arith.constant 0 : index
    %1 = vector.load %arg3[%c0_1, %c0_2] : memref<128x128xbf16, #tpu.memory_space<vmem>>, vector<128x128xbf16>
    %cst = arith.constant dense<0.000000e+00> : vector<8x128xf32>
    %2 = tpu.matmul %0, %1, %cst {dimension_numbers = #tpu.dot_dimension_numbers<[1], [0], [0], [1], [0, 0, 1, 1], [], []>} : vector<8x128xbf16>, vector<128x128xbf16>, vector<8x128xf32> -> vector<8x128xf32>
    %c0_3 = arith.constant 0 : index
    %c0_4 = arith.constant 0 : index
    %3 = vector.load %arg4[%c0_3, %c0_4] : memref<1x128xf32, #tpu.memory_space<vmem>>, vector<1x128xf32>
    %4 = vector.broadcast %3 : vector<1x128xf32> to vector<8x128xf32>
    %5 = arith.addf %2, %4 : vector<8x128xf32>
    %c0_5 = arith.constant 0 : index
    %c0_6 = arith.constant 0 : index
    %6 = vector.load %arg5[%c0_5, %c0_6] : memref<8x128xf32, #tpu.memory_space<vmem>>, vector<8x128xf32>
    tpu.vector_store %arg5[%c0_5, %c0_6], %5 {strides = array<i32>} : memref<8x128xf32, #tpu.memory_space<vmem>>, vector<8x128xf32>,
    return
  }
  func.func @transform_0(%arg0: i32, %arg1: i32) -> (i32, i32) {
    %c0_i32 = arith.constant 0 : i32
    %c0_i32_0 = arith.constant 0 : i32
    return %arg1, %c0_i32 : i32, i32
  }
  func.func @transform_1(%arg0: i32, %arg1: i32) -> (i32, i32) {
    %c0_i32 = arith.constant 0 : i32
    %c0_i32_0 = arith.constant 0 : i32
    return %c0_i32, %arg0 : i32, i32
  }
  func.func @transform_2(%arg0: i32, %arg1: i32) -> (i32, i32) {
    %c0_i32 = arith.constant 0 : i32
    %c0_i32_0 = arith.constant 0 : i32
    return %c0_i32, %arg0 : i32, i32
  }
  func.func @transform_3(%arg0: i32, %arg1: i32) -> (i32, i32) {
    %c0_i32 = arith.constant 0 : i32
    return %arg1, %arg0 : i32, i32
  }
}

module attributes {stable_mosaic.version = 11 : i64} {
  func.func @_prologue_kernel(%arg0: i32, %arg1: memref<8x128xf32, #tpu.memory_space<vmem>>, %arg2: memref<128x128xf32, #tpu.memory_space<vmem>>, %arg3: memref<1x128xf32, #tpu.memory_space<vmem>>, %arg4: memref<1x128xf32, #tpu.memory_space<vmem>>, %arg5: memref<1x128xf32, #tpu.memory_space<vmem>>, %arg6: memref<5x3xf32, #tpu.memory_space<smem>>, %arg7: memref<5x5xf32, #tpu.memory_space<smem>>, %arg8: memref<8x128xbf16, #tpu.memory_space<vmem>>, %arg9: memref<8x5x128xf32, #tpu.memory_space<vmem>>) attributes {dimension_semantics = [#tpu.dimension_semantics<parallel>], iteration_bounds = array<i64: 1>, scalar_prefetch = 0 : i64, scratch_operands = 0 : i64, tpu.core_type = #tpu.core_type<tc>, window_params = [{transform_indices = @transform_0, window_bounds = array<i64: 8, 128>}, {pipeline_mode = #tpu.pipeline_mode<synchronous>, transform_indices = @transform_1, window_bounds = array<i64: 128, 128>}, {pipeline_mode = #tpu.pipeline_mode<synchronous>, transform_indices = @transform_2, window_bounds = array<i64: 1, 128>}, {pipeline_mode = #tpu.pipeline_mode<synchronous>, transform_indices = @transform_3, window_bounds = array<i64: 1, 128>}, {pipeline_mode = #tpu.pipeline_mode<synchronous>, transform_indices = @transform_4, window_bounds = array<i64: 1, 128>}, {transform_indices = @transform_5, window_bounds = array<i64: 5, 3>}, {transform_indices = @transform_6, window_bounds = array<i64: 5, 5>}, {transform_indices = @transform_7, window_bounds = array<i64: 8, 128>}, {transform_indices = @transform_8, window_bounds = array<i64: 8, 5, 128>}]} {
    %0 = tpu.iota {dimensions = array<i32: 1>} : vector<1x128xi32>
    %c32_i32 = arith.constant 32 : i32
    %1 = vector.broadcast %c32_i32 : i32 to vector<1x128xi32>
    %2 = arith.cmpi slt, %0, %1 : vector<1x128xi32>
    %3 = arith.extui %2 : vector<1x128xi1> to vector<1x128xi32>
    %4 = arith.sitofp %3 : vector<1x128xi32> to vector<1x128xf32>
    %c0 = arith.constant 0 : index
    %c0_0 = arith.constant 0 : index
    %5 = vector.load %arg1[%c0, %c0_0] : memref<8x128xf32, #tpu.memory_space<vmem>>, vector<8x128xf32>
    %c0_1 = arith.constant 0 : index
    %c0_2 = arith.constant 0 : index
    %6 = vector.load %arg2[%c0_1, %c0_2] : memref<128x128xf32, #tpu.memory_space<vmem>>, vector<128x128xf32>
    %cst = arith.constant dense<0.000000e+00> : vector<8x128xf32>
    %7 = tpu.matmul %5, %6, %cst {dimension_numbers = #tpu.dot_dimension_numbers<[1], [0], [0], [1], [0, 0, 1, 1], [], []>} : vector<8x128xf32>, vector<128x128xf32>, vector<8x128xf32> -> vector<8x128xf32>
    %c0_3 = arith.constant 0 : index
    %c0_4 = arith.constant 0 : index
    %8 = vector.load %arg3[%c0_3, %c0_4] : memref<1x128xf32, #tpu.memory_space<vmem>>, vector<1x128xf32>
    %9 = vector.broadcast %8 : vector<1x128xf32> to vector<8x128xf32>
    %10 = arith.addf %7, %9 : vector<8x128xf32>
    %cst_5 = arith.constant dense<0.000000e+00> : vector<8xf32>
    %11 = vector.multi_reduction <add>, %10, %cst_5 [1] : vector<8x128xf32> to vector<8xf32>
    %12 = vector.shape_cast %11 : vector<8xf32> to vector<8x1xf32>
    %cst_6 = arith.constant 3.125000e-02 : f32
    %13 = vector.broadcast %cst_6 : f32 to vector<8x1xf32>
    %14 = arith.mulf %12, %13 : vector<8x1xf32>
    %15 = vector.broadcast %14 : vector<8x1xf32> to vector<8x128xf32>
    %16 = arith.subf %10, %15 : vector<8x128xf32>
    %17 = vector.broadcast %4 : vector<1x128xf32> to vector<8x128xf32>
    %18 = arith.mulf %16, %17 : vector<8x128xf32>
    %19 = arith.mulf %18, %18 : vector<8x128xf32>
    %cst_7 = arith.constant dense<0.000000e+00> : vector<8xf32>
    %20 = vector.multi_reduction <add>, %19, %cst_7 [1] : vector<8x128xf32> to vector<8xf32>
    %21 = vector.shape_cast %20 : vector<8xf32> to vector<8x1xf32>
    %cst_8 = arith.constant 3.125000e-02 : f32
    %22 = vector.broadcast %cst_8 : f32 to vector<8x1xf32>
    %23 = arith.mulf %21, %22 : vector<8x1xf32>
    %24 = vector.broadcast %14 : vector<8x1xf32> to vector<8x128xf32>
    %25 = arith.subf %10, %24 : vector<8x128xf32>
    %cst_9 = arith.constant 9.99999974E-6 : f32
    %26 = vector.broadcast %cst_9 : f32 to vector<8x1xf32>
    %27 = arith.addf %23, %26 : vector<8x1xf32>
    %28 = math.rsqrt %27 : vector<8x1xf32>
    %29 = vector.broadcast %28 : vector<8x1xf32> to vector<8x128xf32>
    %30 = arith.mulf %25, %29 : vector<8x128xf32>
    %c0_10 = arith.constant 0 : index
    %c0_11 = arith.constant 0 : index
    %31 = vector.load %arg4[%c0_10, %c0_11] : memref<1x128xf32, #tpu.memory_space<vmem>>, vector<1x128xf32>
    %32 = vector.broadcast %31 : vector<1x128xf32> to vector<8x128xf32>
    %33 = arith.mulf %30, %32 : vector<8x128xf32>
    %c0_12 = arith.constant 0 : index
    %c0_13 = arith.constant 0 : index
    %34 = vector.load %arg5[%c0_12, %c0_13] : memref<1x128xf32, #tpu.memory_space<vmem>>, vector<1x128xf32>
    %35 = vector.broadcast %34 : vector<1x128xf32> to vector<8x128xf32>
    %36 = arith.addf %33, %35 : vector<8x128xf32>
    %cst_14 = arith.constant 0.000000e+00 : f32
    %37 = vector.broadcast %cst_14 : f32 to vector<8x128xf32>
    %cst_15 = arith.constant 0.000000e+00 : f32
    %38 = vector.broadcast %cst_15 : f32 to vector<8x1xf32>
    %c0_16 = arith.constant 0 : index
    %c0_17 = arith.constant 0 : index
    %39 = memref.load %arg6[%c0_16, %c0_17] : memref<5x3xf32, #tpu.memory_space<smem>>
    %c1 = arith.constant 1 : index
    %c0_18 = arith.constant 0 : index
    %40 = memref.load %arg6[%c1, %c0_18] : memref<5x3xf32, #tpu.memory_space<smem>>
    %c2 = arith.constant 2 : index
    %c0_19 = arith.constant 0 : index
    %41 = memref.load %arg6[%c2, %c0_19] : memref<5x3xf32, #tpu.memory_space<smem>>
    %c3 = arith.constant 3 : index
    %c0_20 = arith.constant 0 : index
    %42 = memref.load %arg6[%c3, %c0_20] : memref<5x3xf32, #tpu.memory_space<smem>>
    %c4 = arith.constant 4 : index
    %c0_21 = arith.constant 0 : index
    %43 = memref.load %arg6[%c4, %c0_21] : memref<5x3xf32, #tpu.memory_space<smem>>
    %44 = arith.subf %37, %36 : vector<8x128xf32>
    %45 = vector.broadcast %39 : f32 to vector<1x128xf32>
    %46 = arith.mulf %45, %4 : vector<1x128xf32>
    %47 = vector.broadcast %46 : vector<1x128xf32> to vector<8x128xf32>
    %48 = arith.addf %36, %47 : vector<8x128xf32>
    %49 = vector.broadcast %41 : f32 to vector<8x128xf32>
    %50 = arith.mulf %49, %44 : vector<8x128xf32>
    %51 = arith.addf %48, %50 : vector<8x128xf32>
    %52 = vector.broadcast %40 : f32 to vector<1x128xf32>
    %53 = arith.mulf %52, %4 : vector<1x128xf32>
    %54 = vector.broadcast %53 : vector<1x128xf32> to vector<8x128xf32>
    %55 = arith.addf %36, %54 : vector<8x128xf32>
    %cst_22 = arith.constant 2.000000e+00 : f32
    %56 = arith.mulf %cst_22, %41 : f32
    %57 = vector.broadcast %56 : f32 to vector<8x128xf32>
    %58 = arith.mulf %57, %44 : vector<8x128xf32>
    %59 = arith.addf %55, %58 : vector<8x128xf32>
    %60 = vector.broadcast %42 : f32 to vector<8x128xf32>
    %61 = arith.mulf %60, %59 : vector<8x128xf32>
    %62 = arith.subf %37, %61 : vector<8x128xf32>
    %63 = arith.mulf %59, %59 : vector<8x128xf32>
    %cst_23 = arith.constant dense<0.000000e+00> : vector<8xf32>
    %64 = vector.multi_reduction <add>, %63, %cst_23 [1] : vector<8x128xf32> to vector<8xf32>
    %65 = vector.shape_cast %64 : vector<8xf32> to vector<8x1xf32>
    %66 = math.sqrt %65 : vector<8x1xf32>
    %67 = arith.subf %66, %38 : vector<8x1xf32>
    %68 = vector.broadcast %43 : f32 to vector<8x1xf32>
    %69 = arith.mulf %68, %67 : vector<8x1xf32>
    %70 = arith.addf %38, %69 : vector<8x1xf32>
    %c0_24 = arith.constant 0 : index
    %c1_25 = arith.constant 1 : index
    %71 = memref.load %arg6[%c0_24, %c1_25] : memref<5x3xf32, #tpu.memory_space<smem>>
    %c1_26 = arith.constant 1 : index
    %c1_27 = arith.constant 1 : index
    %72 = memref.load %arg6[%c1_26, %c1_27] : memref<5x3xf32, #tpu.memory_space<smem>>
    %c2_28 = arith.constant 2 : index
    %c1_29 = arith.constant 1 : index
    %73 = memref.load %arg6[%c2_28, %c1_29] : memref<5x3xf32, #tpu.memory_space<smem>>
    %c3_30 = arith.constant 3 : index
    %c1_31 = arith.constant 1 : index
    %74 = memref.load %arg6[%c3_30, %c1_31] : memref<5x3xf32, #tpu.memory_space<smem>>
    %c4_32 = arith.constant 4 : index
    %c1_33 = arith.constant 1 : index
    %75 = memref.load %arg6[%c4_32, %c1_33] : memref<5x3xf32, #tpu.memory_space<smem>>
    %76 = arith.subf %62, %59 : vector<8x128xf32>
    %77 = vector.broadcast %71 : f32 to vector<1x128xf32>
    %78 = arith.mulf %77, %4 : vector<1x128xf32>
    %79 = vector.broadcast %78 : vector<1x128xf32> to vector<8x128xf32>
    %80 = arith.addf %51, %79 : vector<8x128xf32>
    %81 = vector.broadcast %73 : f32 to vector<8x128xf32>
    %82 = arith.mulf %81, %76 : vector<8x128xf32>
    %83 = arith.addf %80, %82 : vector<8x128xf32>
    %84 = vector.broadcast %72 : f32 to vector<1x128xf32>
    %85 = arith.mulf %84, %4 : vector<1x128xf32>
    %86 = vector.broadcast %85 : vector<1x128xf32> to vector<8x128xf32>
    %87 = arith.addf %59, %86 : vector<8x128xf32>
    %cst_34 = arith.constant 2.000000e+00 : f32
    %88 = arith.mulf %cst_34, %73 : f32
    %89 = vector.broadcast %88 : f32 to vector<8x128xf32>
    %90 = arith.mulf %89, %76 : vector<8x128xf32>
    %91 = arith.addf %87, %90 : vector<8x128xf32>
    %92 = vector.broadcast %74 : f32 to vector<8x128xf32>
    %93 = arith.mulf %92, %91 : vector<8x128xf32>
    %94 = arith.subf %62, %93 : vector<8x128xf32>
    %95 = arith.mulf %91, %91 : vector<8x128xf32>
    %cst_35 = arith.constant dense<0.000000e+00> : vector<8xf32>
    %96 = vector.multi_reduction <add>, %95, %cst_35 [1] : vector<8x128xf32> to vector<8xf32>
    %97 = vector.shape_cast %96 : vector<8xf32> to vector<8x1xf32>
    %98 = math.sqrt %97 : vector<8x1xf32>
    %99 = arith.subf %98, %70 : vector<8x1xf32>
    %100 = vector.broadcast %75 : f32 to vector<8x1xf32>
    %101 = arith.mulf %100, %99 : vector<8x1xf32>
    %102 = arith.addf %70, %101 : vector<8x1xf32>
    %c0_36 = arith.constant 0 : index
    %c2_37 = arith.constant 2 : index
    %103 = memref.load %arg6[%c0_36, %c2_37] : memref<5x3xf32, #tpu.memory_space<smem>>
    %c1_38 = arith.constant 1 : index
    %c2_39 = arith.constant 2 : index
    %104 = memref.load %arg6[%c1_38, %c2_39] : memref<5x3xf32, #tpu.memory_space<smem>>
    %c2_40 = arith.constant 2 : index
    %c2_41 = arith.constant 2 : index
    %105 = memref.load %arg6[%c2_40, %c2_41] : memref<5x3xf32, #tpu.memory_space<smem>>
    %c3_42 = arith.constant 3 : index
    %c2_43 = arith.constant 2 : index
    %106 = memref.load %arg6[%c3_42, %c2_43] : memref<5x3xf32, #tpu.memory_space<smem>>
    %c4_44 = arith.constant 4 : index
    %c2_45 = arith.constant 2 : index
    %107 = memref.load %arg6[%c4_44, %c2_45] : memref<5x3xf32, #tpu.memory_space<smem>>
    %108 = arith.subf %94, %91 : vector<8x128xf32>
    %109 = vector.broadcast %103 : f32 to vector<1x128xf32>
    %110 = arith.mulf %109, %4 : vector<1x128xf32>
    %111 = vector.broadcast %110 : vector<1x128xf32> to vector<8x128xf32>
    %112 = arith.addf %83, %111 : vector<8x128xf32>
    %113 = vector.broadcast %105 : f32 to vector<8x128xf32>
    %114 = arith.mulf %113, %108 : vector<8x128xf32>
    %115 = arith.addf %112, %114 : vector<8x128xf32>
    %116 = vector.broadcast %104 : f32 to vector<1x128xf32>
    %117 = arith.mulf %116, %4 : vector<1x128xf32>
    %118 = vector.broadcast %117 : vector<1x128xf32> to vector<8x128xf32>
    %119 = arith.addf %91, %118 : vector<8x128xf32>
    %cst_46 = arith.constant 2.000000e+00 : f32
    %120 = arith.mulf %cst_46, %105 : f32
    %121 = vector.broadcast %120 : f32 to vector<8x128xf32>
    %122 = arith.mulf %121, %108 : vector<8x128xf32>
    %123 = arith.addf %119, %122 : vector<8x128xf32>
    %124 = vector.broadcast %106 : f32 to vector<8x128xf32>
    %125 = arith.mulf %124, %123 : vector<8x128xf32>
    %126 = arith.subf %94, %125 : vector<8x128xf32>
    %127 = arith.mulf %123, %123 : vector<8x128xf32>
    %cst_47 = arith.constant dense<0.000000e+00> : vector<8xf32>
    %128 = vector.multi_reduction <add>, %127, %cst_47 [1] : vector<8x128xf32> to vector<8xf32>
    %129 = vector.shape_cast %128 : vector<8xf32> to vector<8x1xf32>
    %130 = math.sqrt %129 : vector<8x1xf32>
    %131 = arith.subf %130, %102 : vector<8x1xf32>
    %132 = vector.broadcast %107 : f32 to vector<8x1xf32>
    %133 = arith.mulf %132, %131 : vector<8x1xf32>
    %134 = arith.addf %102, %133 : vector<8x1xf32>
    %135 = vector.broadcast %134 : vector<8x1xf32> to vector<8x128xf32>
    %136 = vector.broadcast %4 : vector<1x128xf32> to vector<8x128xf32>
    %137 = arith.mulf %135, %136 : vector<8x128xf32>
    %c0_48 = arith.constant 0 : index
    %c0_49 = arith.constant 0 : index
    %138 = memref.load %arg7[%c0_48, %c0_49] : memref<5x5xf32, #tpu.memory_space<smem>>
    %c0_50 = arith.constant 0 : index
    %c1_51 = arith.constant 1 : index
    %139 = memref.load %arg7[%c0_50, %c1_51] : memref<5x5xf32, #tpu.memory_space<smem>>
    %c0_52 = arith.constant 0 : index
    %c2_53 = arith.constant 2 : index
    %140 = memref.load %arg7[%c0_52, %c2_53] : memref<5x5xf32, #tpu.memory_space<smem>>
    %c0_54 = arith.constant 0 : index
    %c3_55 = arith.constant 3 : index
    %141 = memref.load %arg7[%c0_54, %c3_55] : memref<5x5xf32, #tpu.memory_space<smem>>
    %c0_56 = arith.constant 0 : index
    %c4_57 = arith.constant 4 : index
    %142 = memref.load %arg7[%c0_56, %c4_57] : memref<5x5xf32, #tpu.memory_space<smem>>
    %143 = arith.addf %138, %139 : f32
    %144 = vector.broadcast %143 : f32 to vector<8x128xf32>
    %145 = arith.mulf %144, %115 : vector<8x128xf32>
    %146 = vector.broadcast %139 : f32 to vector<8x128xf32>
    %147 = arith.mulf %146, %123 : vector<8x128xf32>
    %148 = arith.subf %145, %147 : vector<8x128xf32>
    %149 = arith.subf %140, %141 : f32
    %150 = vector.broadcast %149 : f32 to vector<8x128xf32>
    %151 = arith.mulf %150, %126 : vector<8x128xf32>
    %152 = arith.addf %148, %151 : vector<8x128xf32>
    %153 = vector.broadcast %142 : f32 to vector<8x128xf32>
    %154 = arith.mulf %153, %137 : vector<8x128xf32>
    %155 = arith.addf %152, %154 : vector<8x128xf32>
    %c0_58 = arith.constant 0 : index
    %c0_59 = arith.constant 0 : index
    %c0_60 = arith.constant 0 : index
    %156 = vector.load %arg9[%c0_58, %c0_59, %c0_60] : memref<8x5x128xf32, #tpu.memory_space<vmem>>, vector<8x1x128xf32>
    %157 = vector.shape_cast %156 : vector<8x1x128xf32> to vector<8x128xf32>
    %158 = vector.shape_cast %155 : vector<8x128xf32> to vector<8x1x128xf32>
    tpu.vector_store %arg9[%c0_58, %c0_59, %c0_60], %158 {strides = array<i32>} : memref<8x5x128xf32, #tpu.memory_space<vmem>>, vector<8x1x128xf32>,
    %c1_61 = arith.constant 1 : index
    %c0_62 = arith.constant 0 : index
    %159 = memref.load %arg7[%c1_61, %c0_62] : memref<5x5xf32, #tpu.memory_space<smem>>
    %c1_63 = arith.constant 1 : index
    %c1_64 = arith.constant 1 : index
    %160 = memref.load %arg7[%c1_63, %c1_64] : memref<5x5xf32, #tpu.memory_space<smem>>
    %c1_65 = arith.constant 1 : index
    %c2_66 = arith.constant 2 : index
    %161 = memref.load %arg7[%c1_65, %c2_66] : memref<5x5xf32, #tpu.memory_space<smem>>
    %c1_67 = arith.constant 1 : index
    %c3_68 = arith.constant 3 : index
    %162 = memref.load %arg7[%c1_67, %c3_68] : memref<5x5xf32, #tpu.memory_space<smem>>
    %c1_69 = arith.constant 1 : index
    %c4_70 = arith.constant 4 : index
    %163 = memref.load %arg7[%c1_69, %c4_70] : memref<5x5xf32, #tpu.memory_space<smem>>
    %164 = arith.addf %159, %160 : f32
    %165 = vector.broadcast %164 : f32 to vector<8x128xf32>
    %166 = arith.mulf %165, %115 : vector<8x128xf32>
    %167 = vector.broadcast %160 : f32 to vector<8x128xf32>
    %168 = arith.mulf %167, %123 : vector<8x128xf32>
    %169 = arith.subf %166, %168 : vector<8x128xf32>
    %170 = arith.subf %161, %162 : f32
    %171 = vector.broadcast %170 : f32 to vector<8x128xf32>
    %172 = arith.mulf %171, %126 : vector<8x128xf32>
    %173 = arith.addf %169, %172 : vector<8x128xf32>
    %174 = vector.broadcast %163 : f32 to vector<8x128xf32>
    %175 = arith.mulf %174, %137 : vector<8x128xf32>
    %176 = arith.addf %173, %175 : vector<8x128xf32>
    %c0_71 = arith.constant 0 : index
    %c1_72 = arith.constant 1 : index
    %c0_73 = arith.constant 0 : index
    %177 = vector.load %arg9[%c0_71, %c1_72, %c0_73] : memref<8x5x128xf32, #tpu.memory_space<vmem>>, vector<8x1x128xf32>
    %178 = vector.shape_cast %177 : vector<8x1x128xf32> to vector<8x128xf32>
    %179 = vector.shape_cast %176 : vector<8x128xf32> to vector<8x1x128xf32>
    tpu.vector_store %arg9[%c0_71, %c1_72, %c0_73], %179 {strides = array<i32>} : memref<8x5x128xf32, #tpu.memory_space<vmem>>, vector<8x1x128xf32>,
    %c2_74 = arith.constant 2 : index
    %c0_75 = arith.constant 0 : index
    %180 = memref.load %arg7[%c2_74, %c0_75] : memref<5x5xf32, #tpu.memory_space<smem>>
    %c2_76 = arith.constant 2 : index
    %c1_77 = arith.constant 1 : index
    %181 = memref.load %arg7[%c2_76, %c1_77] : memref<5x5xf32, #tpu.memory_space<smem>>
    %c2_78 = arith.constant 2 : index
    %c2_79 = arith.constant 2 : index
    %182 = memref.load %arg7[%c2_78, %c2_79] : memref<5x5xf32, #tpu.memory_space<smem>>
    %c2_80 = arith.constant 2 : index
    %c3_81 = arith.constant 3 : index
    %183 = memref.load %arg7[%c2_80, %c3_81] : memref<5x5xf32, #tpu.memory_space<smem>>
    %c2_82 = arith.constant 2 : index
    %c4_83 = arith.constant 4 : index
    %184 = memref.load %arg7[%c2_82, %c4_83] : memref<5x5xf32, #tpu.memory_space<smem>>
    %185 = arith.addf %180, %181 : f32
    %186 = vector.broadcast %185 : f32 to vector<8x128xf32>
    %187 = arith.mulf %186, %115 : vector<8x128xf32>
    %188 = vector.broadcast %181 : f32 to vector<8x128xf32>
    %189 = arith.mulf %188, %123 : vector<8x128xf32>
    %190 = arith.subf %187, %189 : vector<8x128xf32>
    %191 = arith.subf %182, %183 : f32
    %192 = vector.broadcast %191 : f32 to vector<8x128xf32>
    %193 = arith.mulf %192, %126 : vector<8x128xf32>
    %194 = arith.addf %190, %193 : vector<8x128xf32>
    %195 = vector.broadcast %184 : f32 to vector<8x128xf32>
    %196 = arith.mulf %195, %137 : vector<8x128xf32>
    %197 = arith.addf %194, %196 : vector<8x128xf32>
    %c0_84 = arith.constant 0 : index
    %c2_85 = arith.constant 2 : index
    %c0_86 = arith.constant 0 : index
    %198 = vector.load %arg9[%c0_84, %c2_85, %c0_86] : memref<8x5x128xf32, #tpu.memory_space<vmem>>, vector<8x1x128xf32>
    %199 = vector.shape_cast %198 : vector<8x1x128xf32> to vector<8x128xf32>
    %200 = vector.shape_cast %197 : vector<8x128xf32> to vector<8x1x128xf32>
    tpu.vector_store %arg9[%c0_84, %c2_85, %c0_86], %200 {strides = array<i32>} : memref<8x5x128xf32, #tpu.memory_space<vmem>>, vector<8x1x128xf32>,
    %c3_87 = arith.constant 3 : index
    %c0_88 = arith.constant 0 : index
    %201 = memref.load %arg7[%c3_87, %c0_88] : memref<5x5xf32, #tpu.memory_space<smem>>
    %c3_89 = arith.constant 3 : index
    %c1_90 = arith.constant 1 : index
    %202 = memref.load %arg7[%c3_89, %c1_90] : memref<5x5xf32, #tpu.memory_space<smem>>
    %c3_91 = arith.constant 3 : index
    %c2_92 = arith.constant 2 : index
    %203 = memref.load %arg7[%c3_91, %c2_92] : memref<5x5xf32, #tpu.memory_space<smem>>
    %c3_93 = arith.constant 3 : index
    %c3_94 = arith.constant 3 : index
    %204 = memref.load %arg7[%c3_93, %c3_94] : memref<5x5xf32, #tpu.memory_space<smem>>
    %c3_95 = arith.constant 3 : index
    %c4_96 = arith.constant 4 : index
    %205 = memref.load %arg7[%c3_95, %c4_96] : memref<5x5xf32, #tpu.memory_space<smem>>
    %206 = arith.addf %201, %202 : f32
    %207 = vector.broadcast %206 : f32 to vector<8x128xf32>
    %208 = arith.mulf %207, %115 : vector<8x128xf32>
    %209 = vector.broadcast %202 : f32 to vector<8x128xf32>
    %210 = arith.mulf %209, %123 : vector<8x128xf32>
    %211 = arith.subf %208, %210 : vector<8x128xf32>
    %212 = arith.subf %203, %204 : f32
    %213 = vector.broadcast %212 : f32 to vector<8x128xf32>
    %214 = arith.mulf %213, %126 : vector<8x128xf32>
    %215 = arith.addf %211, %214 : vector<8x128xf32>
    %216 = vector.broadcast %205 : f32 to vector<8x128xf32>
    %217 = arith.mulf %216, %137 : vector<8x128xf32>
    %218 = arith.addf %215, %217 : vector<8x128xf32>
    %c0_97 = arith.constant 0 : index
    %c3_98 = arith.constant 3 : index
    %c0_99 = arith.constant 0 : index
    %219 = vector.load %arg9[%c0_97, %c3_98, %c0_99] : memref<8x5x128xf32, #tpu.memory_space<vmem>>, vector<8x1x128xf32>
    %220 = vector.shape_cast %219 : vector<8x1x128xf32> to vector<8x128xf32>
    %221 = vector.shape_cast %218 : vector<8x128xf32> to vector<8x1x128xf32>
    tpu.vector_store %arg9[%c0_97, %c3_98, %c0_99], %221 {strides = array<i32>} : memref<8x5x128xf32, #tpu.memory_space<vmem>>, vector<8x1x128xf32>,
    %c4_100 = arith.constant 4 : index
    %c0_101 = arith.constant 0 : index
    %222 = memref.load %arg7[%c4_100, %c0_101] : memref<5x5xf32, #tpu.memory_space<smem>>
    %c4_102 = arith.constant 4 : index
    %c1_103 = arith.constant 1 : index
    %223 = memref.load %arg7[%c4_102, %c1_103] : memref<5x5xf32, #tpu.memory_space<smem>>
    %c4_104 = arith.constant 4 : index
    %c2_105 = arith.constant 2 : index
    %224 = memref.load %arg7[%c4_104, %c2_105] : memref<5x5xf32, #tpu.memory_space<smem>>
    %c4_106 = arith.constant 4 : index
    %c3_107 = arith.constant 3 : index
    %225 = memref.load %arg7[%c4_106, %c3_107] : memref<5x5xf32, #tpu.memory_space<smem>>
    %c4_108 = arith.constant 4 : index
    %c4_109 = arith.constant 4 : index
    %226 = memref.load %arg7[%c4_108, %c4_109] : memref<5x5xf32, #tpu.memory_space<smem>>
    %227 = arith.addf %222, %223 : f32
    %228 = vector.broadcast %227 : f32 to vector<8x128xf32>
    %229 = arith.mulf %228, %115 : vector<8x128xf32>
    %230 = vector.broadcast %223 : f32 to vector<8x128xf32>
    %231 = arith.mulf %230, %123 : vector<8x128xf32>
    %232 = arith.subf %229, %231 : vector<8x128xf32>
    %233 = arith.subf %224, %225 : f32
    %234 = vector.broadcast %233 : f32 to vector<8x128xf32>
    %235 = arith.mulf %234, %126 : vector<8x128xf32>
    %236 = arith.addf %232, %235 : vector<8x128xf32>
    %237 = vector.broadcast %226 : f32 to vector<8x128xf32>
    %238 = arith.mulf %237, %137 : vector<8x128xf32>
    %239 = arith.addf %236, %238 : vector<8x128xf32>
    %c0_110 = arith.constant 0 : index
    %c4_111 = arith.constant 4 : index
    %c0_112 = arith.constant 0 : index
    %240 = vector.load %arg9[%c0_110, %c4_111, %c0_112] : memref<8x5x128xf32, #tpu.memory_space<vmem>>, vector<8x1x128xf32>
    %241 = vector.shape_cast %240 : vector<8x1x128xf32> to vector<8x128xf32>
    %242 = vector.shape_cast %239 : vector<8x128xf32> to vector<8x1x128xf32>
    tpu.vector_store %arg9[%c0_110, %c4_111, %c0_112], %242 {strides = array<i32>} : memref<8x5x128xf32, #tpu.memory_space<vmem>>, vector<8x1x128xf32>,
    %243 = arith.addf %155, %197 : vector<8x128xf32>
    %cst_113 = arith.constant 5.000000e-01 : f32
    %244 = vector.broadcast %cst_113 : f32 to vector<8x128xf32>
    %245 = arith.mulf %243, %244 : vector<8x128xf32>
    %246 = arith.addf %176, %218 : vector<8x128xf32>
    %cst_114 = arith.constant 5.000000e-01 : f32
    %247 = vector.broadcast %cst_114 : f32 to vector<8x128xf32>
    %248 = arith.mulf %246, %247 : vector<8x128xf32>
    %249 = arith.subf %245, %239 : vector<8x128xf32>
    %250 = arith.mulf %249, %249 : vector<8x128xf32>
    %cst_115 = arith.constant dense<0.000000e+00> : vector<8xf32>
    %251 = vector.multi_reduction <add>, %250, %cst_115 [1] : vector<8x128xf32> to vector<8xf32>
    %252 = vector.shape_cast %251 : vector<8xf32> to vector<8x1xf32>
    %253 = arith.subf %248, %239 : vector<8x128xf32>
    %254 = arith.mulf %253, %253 : vector<8x128xf32>
    %cst_116 = arith.constant dense<0.000000e+00> : vector<8xf32>
    %255 = vector.multi_reduction <add>, %254, %cst_116 [1] : vector<8x128xf32> to vector<8xf32>
    %256 = vector.shape_cast %255 : vector<8xf32> to vector<8x1xf32>
    %257 = arith.cmpf ogt, %252, %256 : vector<8x1xf32>
    %258 = vector.shape_cast %257 : vector<8x1xi1> to vector<8x1xi1>
    %259 = vector.broadcast %258 : vector<8x1xi1> to vector<8x128xi1>
    %260 = arith.select %259, %245, %248 : vector<8x128xi1>, vector<8x128xf32>
    %261 = arith.subf %260, %239 : vector<8x128xf32>
    %262 = arith.truncf %261 : vector<8x128xf32> to vector<8x128xbf16>
    %c0_117 = arith.constant 0 : index
    %c0_118 = arith.constant 0 : index
    %263 = vector.load %arg8[%c0_117, %c0_118] : memref<8x128xbf16, #tpu.memory_space<vmem>>, vector<8x128xbf16>
    tpu.vector_store %arg8[%c0_117, %c0_118], %262 {strides = array<i32>} : memref<8x128xbf16, #tpu.memory_space<vmem>>, vector<8x128xbf16>,
    return
  }
  func.func @transform_0(%arg0: i32) -> (i32, i32) {
    %c0_i32 = arith.constant 0 : i32
    %c0_i32_0 = arith.constant 0 : i32
    return %arg0, %c0_i32 : i32, i32
  }
  func.func @transform_1(%arg0: i32) -> (i32, i32) {
    %c0_i32 = arith.constant 0 : i32
    %c0_i32_0 = arith.constant 0 : i32
    %c0_i32_1 = arith.constant 0 : i32
    return %c0_i32, %c0_i32_0 : i32, i32
  }
  func.func @transform_2(%arg0: i32) -> (i32, i32) {
    %c0_i32 = arith.constant 0 : i32
    %c0_i32_0 = arith.constant 0 : i32
    %c0_i32_1 = arith.constant 0 : i32
    return %c0_i32, %c0_i32_0 : i32, i32
  }
  func.func @transform_3(%arg0: i32) -> (i32, i32) {
    %c0_i32 = arith.constant 0 : i32
    %c0_i32_0 = arith.constant 0 : i32
    %c0_i32_1 = arith.constant 0 : i32
    return %c0_i32, %c0_i32_0 : i32, i32
  }
  func.func @transform_4(%arg0: i32) -> (i32, i32) {
    %c0_i32 = arith.constant 0 : i32
    %c0_i32_0 = arith.constant 0 : i32
    %c0_i32_1 = arith.constant 0 : i32
    return %c0_i32, %c0_i32_0 : i32, i32
  }
  func.func @transform_5(%arg0: i32) -> (i32, i32) {
    %c0_i32 = arith.constant 0 : i32
    %c0_i32_0 = arith.constant 0 : i32
    %c0_i32_1 = arith.constant 0 : i32
    return %c0_i32, %c0_i32_0 : i32, i32
  }
  func.func @transform_6(%arg0: i32) -> (i32, i32) {
    %c0_i32 = arith.constant 0 : i32
    %c0_i32_0 = arith.constant 0 : i32
    %c0_i32_1 = arith.constant 0 : i32
    return %c0_i32, %c0_i32_0 : i32, i32
  }
  func.func @transform_7(%arg0: i32) -> (i32, i32) {
    %c0_i32 = arith.constant 0 : i32
    %c0_i32_0 = arith.constant 0 : i32
    return %arg0, %c0_i32 : i32, i32
  }
  func.func @transform_8(%arg0: i32) -> (i32, i32, i32) {
    %c0_i32 = arith.constant 0 : i32
    %c0_i32_0 = arith.constant 0 : i32
    %c0_i32_1 = arith.constant 0 : i32
    return %arg0, %c0_i32, %c0_i32_0 : i32, i32, i32
  }
}

</mosaic_0001>

<llo_original>
// kernel: autonomic_forward.3
$region0: #{autonomic_forward.3}
  #allocation0 [shape = 'u32[]', space=smem, size = 0x4, offset = 0x4, fixed_abs, tag = 'smem constant byte address 0x4 - core index']
  #allocation1 [shape = 'u32[144,128]{1,0:T(1,128)}', space=vmem, size = 0x12000, scoped, tag = 'internal scratch']
  %s0 = inlined_call_operand.vmem [shape: bf16[8,128], index: 0, kind: input, shape index: {}]
  %s1 = inlined_call_operand.vmem [shape: bf16[128,128], index: 1, kind: input, shape index: {}]
  %s2 = inlined_call_operand.vmem [shape: f32[1,128], index: 2, kind: input, shape index: {}]
  %s3 = inlined_call_operand.vmem [shape: f32[8,128], index: 3, kind: output, shape index: {}]
  %s4 = sld [smem:[#allocation0]]
  $region22: #{autonomic_forward.3} parent=0
    _
  %s6 = ssub.s32 1, %s4
  %s7 = scalar_select 0, %s6, %s4
  // Predicated region
  $region2: #{autonomic_forward.3} parent=0 // pred_check
    _
  $region3: #{autonomic_forward.3} parent=0 // pred_check_branch
    %9 = sbr.rel (0) target = $region5
  $region4: #{autonomic_forward.3} parent=0 // pred_region
    _
  $region5: #{autonomic_forward.3} parent=0 // pred_fallthru
    _
  // Predicated region
  $region6: #{autonomic_forward.3} parent=0 // pred_check
    _
  $region7: #{autonomic_forward.3} parent=0 // pred_check_branch
    %11 = sbr.rel (0) target = $region9
  $region8: #{autonomic_forward.3} parent=0 // pred_region
    _
  $region9: #{autonomic_forward.3} parent=0 // pred_fallthru
    _
  // Predicated region
  $region10: #{autonomic_forward.3} parent=0 // pred_check
    _
  $region11: #{autonomic_forward.3} parent=0 // pred_check_branch
    %13 = sbr.rel (0) target = $region13
  $region12: #{autonomic_forward.3} parent=0 // pred_region
    _
  $region13: #{autonomic_forward.3} parent=0 // pred_fallthru
    _
  %v15 = vld [vmem:[%s0] sm:$0xf]
  %v16 = vld [vmem:[%s1] sm:$0xf]
  %v17 = vld [vmem:[%s1 + $0x4] sm:$0xf]
  %v18 = vld [vmem:[%s1 + $0x8] sm:$0xf]
  %v19 = vld [vmem:[%s1 + $0xc] sm:$0xf]
  %v20 = vld [vmem:[%s1 + $0x10] sm:$0xf]
  %v21 = vld [vmem:[%s1 + $0x14] sm:$0xf]
  %v22 = vld [vmem:[%s1 + $0x18] sm:$0xf]
  %v23 = vld [vmem:[%s1 + $0x1c] sm:$0xf]
  %v24 = vld [vmem:[%s1 + $0x20] sm:$0xf]
  %v25 = vld [vmem:[%s1 + $0x24] sm:$0xf]
  %v26 = vld [vmem:[%s1 + $0x28] sm:$0xf]
  %v27 = vld [vmem:[%s1 + $0x2c] sm:$0xf]
  %v28 = vld [vmem:[%s1 + $0x30] sm:$0xf]
  %v29 = vld [vmem:[%s1 + $0x34] sm:$0xf]
  %v30 = vld [vmem:[%s1 + $0x38] sm:$0xf]
  %v31 = vld [vmem:[%s1 + $0x3c] sm:$0xf]
  %v32 = vld [vmem:[%s2] sm:$0x1]
  %v34 = vlaneseq
  %v35 = vshrl.u32 %v34, 7
  %v36 = vsub.s32 0, %v35
  %v37 = vrot.slane %v32, %v36
  %v55 = vunpack.c.l.b16 %v16
  %v56 = vunpack.c.l.b16 %v17
  %v57 = vunpack.c.l.b16 %v18
  %v58 = vunpack.c.l.b16 %v19
  %v59 = vunpack.c.l.b16 %v20
  %v60 = vunpack.c.l.b16 %v21
  %v61 = vunpack.c.l.b16 %v22
  %v62 = vunpack.c.l.b16 %v23
  %v63 = vunpack.c.l.b16 %v24
  %v64 = vunpack.c.l.b16 %v25
  %v65 = vunpack.c.l.b16 %v26
  %v66 = vunpack.c.l.b16 %v27
  %v67 = vunpack.c.l.b16 %v28
  %v68 = vunpack.c.l.b16 %v29
  %v69 = vunpack.c.l.b16 %v30
  %v70 = vunpack.c.l.b16 %v31
  %v71 = vpack.c.b16 %v56, %v55
  %v72 = vpack.c.b16 %v58, %v57
  %v73 = vpack.c.b16 %v60, %v59
  %v74 = vpack.c.b16 %v62, %v61
  %v75 = vpack.c.b16 %v64, %v63
  %v76 = vpack.c.b16 %v66, %v65
  %v77 = vpack.c.b16 %v68, %v67
  %v78 = vpack.c.b16 %v70, %v69
  %87 = vmatprep.subr.bf16.mxu0 0
  %88 = vmatpush1.bf16.msra.mxu0 %v71
  %89 = vmatprep.subr.bf16.mxu0 0
  %90 = vmatpush1.bf16.msra.mxu0 %v72
  %91 = vmatprep.subr.bf16.mxu0 0
  %92 = vmatpush1.bf16.msra.mxu0 %v73
  %93 = vmatprep.subr.bf16.mxu0 0
  %94 = vmatpush1.bf16.msra.mxu0 %v74
  %95 = vmatprep.subr.bf16.mxu0 0
  %96 = vmatpush1.bf16.msra.mxu0 %v75
  %97 = vmatprep.subr.bf16.mxu0 0
  %98 = vmatpush1.bf16.msra.mxu0 %v76
  %99 = vmatprep.subr.bf16.mxu0 0
  %100 = vmatpush1.bf16.msra.mxu0 %v77
  %101 = vmatprep.subr.bf16.mxu0 0
  %102 = vmatpush1.bf16.msra.mxu0 %v78
  %103 = vmatprep.subr.bf16.mxu0 0
  %104 = vmatpush1.bf16.msra.mxu0 0
  %105 = vmatprep.subr.bf16.mxu0 0
  %106 = vmatpush1.bf16.msra.mxu0 0
  %107 = vmatprep.subr.bf16.mxu0 0
  %108 = vmatpush1.bf16.msra.mxu0 0
  %109 = vmatprep.subr.bf16.mxu0 0
  %110 = vmatpush1.bf16.msra.mxu0 0
  %111 = vmatprep.subr.bf16.mxu0 0
  %112 = vmatpush1.bf16.msra.mxu0 0
  %113 = vmatprep.subr.bf16.mxu0 0
  %114 = vmatpush1.bf16.msra.mxu0 0
  %115 = vmatprep.subr.bf16.mxu0 0
  %116 = vmatpush1.bf16.msra.mxu0 0
  %117 = vmatprep.subr.bf16.mxu0 0
  %118 = vmatpush1.bf16.msra.mxu0 0
  %119 = vmatprep.mubr.bf16.mxu0 0
  %120 = vmatmul.mubr.bf16.gmra.mrb[0].mxu0 %v15
  %v121 = vpop.f32.mrb[0].mxu0
  %v122 = vadd.f32 %v37, %v121
  %v123 = vpop.f32.mrb[0].mxu0
  %v124 = vpop.f32.mrb[0].mxu0
  %v125 = vpop.f32.mrb[0].mxu0
  %126 = vdwg.mxu0
  %127 = vst [vmem:[%s3] sm:$0xff] %v122
  // Predicated region
  $region14: #{autonomic_forward.3} parent=0 // pred_check
    _
  $region15: #{autonomic_forward.3} parent=0 // pred_check_branch
    %129 = sbr.rel (0) target = $region17
  $region16: #{autonomic_forward.3} parent=0 // pred_region
    _
  $region17: #{autonomic_forward.3} parent=0 // pred_fallthru
    _
  // Predicated region
  $region18: #{autonomic_forward.3} parent=0 // pred_check
    _
  $region19: #{autonomic_forward.3} parent=0 // pred_check_branch
    %131 = sbr.rel (0) target = $region21
  $region20: #{autonomic_forward.3} parent=0 // pred_region
    _
  $region21: #{autonomic_forward.3} parent=0 // pred_fallthru
    _

// kernel: autonomic_forward.2
$region0: #{autonomic_forward.2}
  #allocation0 [shape = 'u32[]', space=smem, size = 0x4, offset = 0x4, fixed_abs, tag = 'smem constant byte address 0x4 - core index']
  #allocation1 [shape = 'u32[144,128]{1,0:T(1,128)}', space=vmem, size = 0x12000, scoped, tag = 'internal scratch']
  %s0 = inlined_call_operand.vmem [shape: f32[8,128], index: 0, kind: input, shape index: {}]
  %s1 = inlined_call_operand.vmem [shape: f32[128,128], index: 1, kind: input, shape index: {}]
  %s2 = inlined_call_operand.vmem [shape: f32[1,128], index: 2, kind: input, shape index: {}]
  %s3 = inlined_call_operand.vmem [shape: f32[1,128], index: 3, kind: input, shape index: {}]
  %s4 = inlined_call_operand.vmem [shape: f32[1,128], index: 4, kind: input, shape index: {}]
  %s5 = inlined_call_operand.vmem [shape: f32[5,3], index: 5, kind: input, shape index: {}]
  %s6 = inlined_call_operand.vmem [shape: f32[5,5], index: 6, kind: input, shape index: {}]
  %s7 = inlined_call_operand.vmem [shape: bf16[8,128], index: 7, kind: output, shape index: {0}]
  %s8 = inlined_call_operand.vmem [shape: f32[8,5,128], index: 8, kind: output, shape index: {1}]
  %9 = xla_tuple %s7, %s8
  %s10 = sld [smem:[#allocation0]]
  $region54: #{autonomic_forward.2} parent=0
    _
  %s12 = ssub.s32 1, %s10
  %s13 = scalar_select 0, %s12, %s10
  $region1: #{autonomic_forward.2} parent=0
    #allocation2 [shape = 'u8[4096]{0}', space=smem, size = 0x1000, scoped, tag = 'input window, operand 5, single buffered']
    #allocation3 [shape = 's32[1]{0}', space=sflag, size = 0x4, scoped, tag = 'scoped memory for autonomic_forward.2']
    #allocation4 [shape = 'u8[4096]{0}', space=smem, size = 0x1000, scoped, tag = 'input window, operand 6, single buffered']
    #allocation5 [shape = 's32[1]{0}', space=sflag, size = 0x4, scoped, tag = 'scoped memory for autonomic_forward.2']
    %14 = vsyncpa [#allocation3], 0
    %15 = vsyncpa [#allocation5], 0
    // Predicated region
    $region2: #{autonomic_forward.2} parent=1 // pred_check
      _
    $region3: #{autonomic_forward.2} parent=1 // pred_check_branch
      %17 = sbr.rel (0) target = $region5
    $region4: #{autonomic_forward.2} parent=1 // pred_region
      _
    $region5: #{autonomic_forward.2} parent=1 // pred_fallthru
      _
    // Predicated region
    $region6: #{autonomic_forward.2} parent=1 // pred_check
      _
    $region7: #{autonomic_forward.2} parent=1 // pred_check_branch
      %19 = sbr.rel (0) target = $region9
    $region8: #{autonomic_forward.2} parent=1 // pred_region
      _
    $region9: #{autonomic_forward.2} parent=1 // pred_fallthru
      _
    // Predicated region
    $region10: #{autonomic_forward.2} parent=1 // pred_check
      _
    $region11: #{autonomic_forward.2} parent=1 // pred_check_branch
      %21 = sbr.rel (0) target = $region13
    $region12: #{autonomic_forward.2} parent=1 // pred_region
      _
    $region13: #{autonomic_forward.2} parent=1 // pred_fallthru
      _
    // Predicated region
    $region14: #{autonomic_forward.2} parent=1 // pred_check
      _
    $region15: #{autonomic_forward.2} parent=1 // pred_check_branch
      %23 = sbr.rel (0) target = $region17
    $region16: #{autonomic_forward.2} parent=1 // pred_region
      _
    $region17: #{autonomic_forward.2} parent=1 // pred_fallthru
      _
    // Predicated region
    $region18: #{autonomic_forward.2} parent=1 // pred_check
      _
    $region19: #{autonomic_forward.2} parent=1 // pred_check_branch
      %25 = sbr.rel (0) target = $region21
    $region20: #{autonomic_forward.2} parent=1 // pred_region
      _
    $region21: #{autonomic_forward.2} parent=1 // pred_fallthru
      _
    // Predicated region
    $region22: #{autonomic_forward.2} parent=1 // pred_check
      _
    $region23: #{autonomic_forward.2} parent=1 // pred_check_branch
      %27 = sbr.rel (0) target = $region25
    $region24: #{autonomic_forward.2} parent=1 // pred_region
      %s29 = ssub.s32 128, 128
      %30 = vsyncadd [#allocation3], %s29
      %s32 = sshll.u32 %s5, 4
      %s33 = int_to_ptr.vmem [resolvable:$true] %s32
      %35 = dma.vmem_to_smem %s33, 128, [#allocation2], [#allocation3]
    $region25: #{autonomic_forward.2} parent=1 // pred_fallthru
      _
    // Predicated region
    $region26: #{autonomic_forward.2} parent=1 // pred_check
      _
    $region27: #{autonomic_forward.2} parent=1 // pred_check_branch
      %37 = sbr.rel (0) target = $region29
    $region28: #{autonomic_forward.2} parent=1 // pred_region
      %s39 = ssub.s32 128, 128
      %40 = vsyncadd [#allocation5], %s39
      %s42 = sshll.u32 %s6, 4
      %s43 = int_to_ptr.vmem [resolvable:$true] %s42
      %45 = dma.vmem_to_smem %s43, 128, [#allocation4], [#allocation5]
    $region29: #{autonomic_forward.2} parent=1 // pred_fallthru
      _
    // Predicated region
    $region30: #{autonomic_forward.2} parent=1 // pred_check
      _
    $region31: #{autonomic_forward.2} parent=1 // pred_check_branch
      %47 = sbr.rel (0) target = $region33
    $region32: #{autonomic_forward.2} parent=1 // pred_region
      %48 = dma.done [#allocation3], 128
    $region33: #{autonomic_forward.2} parent=1 // pred_fallthru
      _
    // Predicated region
    $region34: #{autonomic_forward.2} parent=1 // pred_check
      _
    $region35: #{autonomic_forward.2} parent=1 // pred_check_branch
      %50 = sbr.rel (0) target = $region37
    $region36: #{autonomic_forward.2} parent=1 // pred_region
      %51 = dma.done [#allocation5], 128
    $region37: #{autonomic_forward.2} parent=1 // pred_fallthru
      _
    %52 = sfence
    %v53 = vlaneseq
    %v54 = vand.u32 %v53, 127
    %vm55 = vcmp.lt.s32.totalorder %v54, 32
    %v56 = vsel %vm55, 1, 0
    %v57 = vcvt.s32.f32 %v56
    %v58 = vld [vmem:[%s0] sm:$0xff]
    %v59 = vld [vmem:[%s1] sm:$0xff]
    %v60 = vld [vmem:[%s1 + $0x8] sm:$0xff]
    %v61 = vld [vmem:[%s1 + $0x10] sm:$0xff]
    %v62 = vld [vmem:[%s1 + $0x18] sm:$0xff]
    %v63 = vld [vmem:[%s1 + $0x20] sm:$0xff]
    %v64 = vld [vmem:[%s1 + $0x28] sm:$0xff]
    %v65 = vld [vmem:[%s1 + $0x30] sm:$0xff]
    %v66 = vld [vmem:[%s1 + $0x38] sm:$0xff]
    %v67 = vld [vmem:[%s1 + $0x40] sm:$0xff]
    %v68 = vld [vmem:[%s1 + $0x48] sm:$0xff]
    %v69 = vld [vmem:[%s1 + $0x50] sm:$0xff]
    %v70 = vld [vmem:[%s1 + $0x58] sm:$0xff]
    %v71 = vld [vmem:[%s1 + $0x60] sm:$0xff]
    %v72 = vld [vmem:[%s1 + $0x68] sm:$0xff]
    %v73 = vld [vmem:[%s1 + $0x70] sm:$0xff]
    %v74 = vld [vmem:[%s1 + $0x78] sm:$0xff]
    %v75 = vld [vmem:[%s2] sm:$0x1]
    %v77 = vlaneseq
    %v78 = vshrl.u32 %v77, 7
    %v79 = vsub.s32 0, %v78
    %v80 = vrot.slane %v75, %v79
    %82 = vmatprep.subr.mxu0 0.0
    %83 = vmatpush1.msra.mxu0 %v59
    %84 = vmatprep.subr.mxu0 0.0
    %85 = vmatpush1.msra.mxu0 %v60
    %86 = vmatprep.subr.mxu0 0.0
    %87 = vmatpush1.msra.mxu0 %v61
    %88 = vmatprep.subr.mxu0 0.0
    %89 = vmatpush1.msra.mxu0 %v62
    %90 = vmatprep.subr.mxu0 0.0
    %91 = vmatpush1.msra.mxu0 %v63
    %92 = vmatprep.subr.mxu0 0.0
    %93 = vmatpush1.msra.mxu0 %v64
    %94 = vmatprep.subr.mxu0 0.0
    %95 = vmatpush1.msra.mxu0 %v65
    %96 = vmatprep.subr.mxu0 0.0
    %97 = vmatpush1.msra.mxu0 %v66
    %98 = vmatprep.subr.mxu0 0.0
    %99 = vmatpush1.msra.mxu0 %v67
    %100 = vmatprep.subr.mxu0 0.0
    %101 = vmatpush1.msra.mxu0 %v68
    %102 = vmatprep.subr.mxu0 0.0
    %103 = vmatpush1.msra.mxu0 %v69
    %104 = vmatprep.subr.mxu0 0.0
    %105 = vmatpush1.msra.mxu0 %v70
    %106 = vmatprep.subr.mxu0 0.0
    %107 = vmatpush1.msra.mxu0 %v71
    %108 = vmatprep.subr.mxu0 0.0
    %109 = vmatpush1.msra.mxu0 %v72
    %110 = vmatprep.subr.mxu0 0.0
    %111 = vmatpush1.msra.mxu0 %v73
    %112 = vmatprep.subr.mxu0 0.0
    %113 = vmatpush1.msra.mxu0 %v74
    %114 = vmatprep.subr.mxu0 0.0
    %115 = vmatpush1.msra.mxu0 0.0
    %116 = vmatprep.subr.mxu0 0.0
    %117 = vmatpush1.msra.mxu0 0.0
    %118 = vmatprep.subr.mxu0 0.0
    %119 = vmatpush1.msra.mxu0 0.0
    %120 = vmatprep.subr.mxu0 0.0
    %121 = vmatpush1.msra.mxu0 0.0
    %122 = vmatprep.subr.mxu0 0.0
    %123 = vmatpush1.msra.mxu0 0.0
    %124 = vmatprep.subr.mxu0 0.0
    %125 = vmatpush1.msra.mxu0 0.0
    %126 = vmatprep.subr.mxu0 0.0
    %127 = vmatpush1.msra.mxu0 0.0
    %128 = vmatprep.subr.mxu0 0.0
    %129 = vmatpush1.msra.mxu0 0.0
    %130 = vmatprep.subr.mxu0 0.0
    %131 = vmatpush1.msra.mxu0 0.0
    %132 = vmatprep.subr.mxu0 0.0
    %133 = vmatpush1.msra.mxu0 0.0
    %134 = vmatprep.subr.mxu0 0.0
    %135 = vmatpush1.msra.mxu0 0.0
    %136 = vmatprep.subr.mxu0 0.0
    %137 = vmatpush1.msra.mxu0 0.0
    %138 = vmatprep.subr.mxu0 0.0
    %139 = vmatpush1.msra.mxu0 0.0
    %140 = vmatprep.subr.mxu0 0.0
    %141 = vmatpush1.msra.mxu0 0.0
    %142 = vmatprep.subr.mxu0 0.0
    %143 = vmatpush1.msra.mxu0 0.0
    %144 = vmatprep.subr.mxu0 0.0
    %145 = vmatpush1.msra.mxu0 0.0
    %146 = vmatprep.mubr.f32.mxu0 0.0
    %147 = vmatmul.mubr.f32.gmra.mrb[0].mxu0 %v58
    %v148 = vpop.f32.mrb[0].mxu0
    %v149 = vadd.f32 %v80, %v148
    %v150 = vpop.f32.mrb[0].mxu0
    %151 = vdwg.mxu0
    %152 = vadd.xlane.f32.xlu0 %v149
    %v153 = vpop.xlane.xlu0 %152
    %v154 = vmul.f32 %v153, 0.03125
    %v155 = vsub.f32 %v149, %v154
    %v156 = vmul.f32 %v155, %v57
    %v157 = vmul.f32 %v156, %v156
    %158 = vadd.xlane.f32.xlu0 %v157
    %v159 = vpop.xlane.xlu0 %158
    %v160 = vmul.f32 %v159, 0.03125
    %v161 = vadd.f32 %v160, 1e-05
    %v162 = vrsqrt.pop %v161
    %v163 = vmul.f32 %v155, %v162
    %v164 = vld [vmem:[%s3] sm:$0x1]
    %v166 = vlaneseq
    %v167 = vshrl.u32 %v166, 7
    %v168 = vsub.s32 0, %v167
    %v169 = vrot.slane %v164, %v168
    %v171 = vmul.f32 %v163, %v169
    %v172 = vld [vmem:[%s4] sm:$0x1]
    %v174 = vlaneseq
    %v175 = vshrl.u32 %v174, 7
    %v176 = vsub.s32 0, %v175
    %v177 = vrot.slane %v172, %v176
    %v179 = vadd.f32 %v171, %v177
    %s180 = sld [smem:[#allocation2]]
    %s181 = sld [smem:[#allocation2 + $0x80]]
    %s182 = sld [smem:[#allocation2 + $0x100]]
    %s183 = sld [smem:[#allocation2 + $0x180]]
    %s184 = sld [smem:[#allocation2 + $0x200]]
    %v185 = vsub.f32 0.0, %v179
    %v186 = vstv %s180
    %v187 = vmul.f32 %v186, %v57
    %v188 = vadd.f32 %v179, %v187
    %v189 = vstv %s182
    %v190 = vmul.f32 %v189, %v185
    %v191 = vadd.f32 %v188, %v190
    %v192 = vstv %s181
    %v193 = vmul.f32 %v192, %v57
    %v194 = vadd.f32 %v179, %v193
    %s195 = smul.f32 %s182, 2.0
    %v196 = vstv %s195
    %v197 = vmul.f32 %v196, %v185
    %v198 = vadd.f32 %v194, %v197
    %v199 = vstv %s183
    %v200 = vmul.f32 %v199, %v198
    %v201 = vsub.f32 0.0, %v200
    %v202 = vmul.f32 %v198, %v198
    %203 = vadd.xlane.f32.xlu0 %v202
    %v204 = vpop.xlane.xlu0 %203
    %v205 = vrsqrt.pop %v204
    %v206 = vmul.f32 %v204, %v205
    %vm207 = vcmp.eq.f32.partialorder %v204, inf
    %v208 = vsel %vm207, %v204, %v206
    %vm209 = vcmp.eq.f32.partialorder %v204, 0.0
    %v210 = vand.u32 %v204, 2147483648
    %v211 = vsel %vm209, %v210, %v208
    %v212 = vstv %s184
    %v213 = vmul.f32 %v212, %v211
    %v214 = vadd.f32 %v213, 0.0
    %s215 = sld [smem:[#allocation2 + $0x1]]
    %s216 = sld [smem:[#allocation2 + $0x81]]
    %s217 = sld [smem:[#allocation2 + $0x101]]
    %s218 = sld [smem:[#allocation2 + $0x181]]
    %s219 = sld [smem:[#allocation2 + $0x201]]
    %v220 = vsub.f32 %v201, %v198
    %v221 = vstv %s215
    %v222 = vmul.f32 %v221, %v57
    %v223 = vadd.f32 %v191, %v222
    %v224 = vstv %s217
    %v225 = vmul.f32 %v224, %v220
    %v226 = vadd.f32 %v223, %v225
    %v227 = vstv %s216
    %v228 = vmul.f32 %v227, %v57
    %v229 = vadd.f32 %v198, %v228
    %s230 = smul.f32 %s217, 2.0
    %v231 = vstv %s230
    %v232 = vmul.f32 %v231, %v220
    %v233 = vadd.f32 %v229, %v232
    %v234 = vstv %s218
    %v235 = vmul.f32 %v234, %v233
    %v236 = vsub.f32 %v201, %v235
    %v237 = vmul.f32 %v233, %v233
    %238 = vadd.xlane.f32.xlu0 %v237
    %v239 = vpop.xlane.xlu0 %238
    %v240 = vrsqrt.pop %v239
    %v241 = vmul.f32 %v239, %v240
    %vm242 = vcmp.eq.f32.partialorder %v239, inf
    %v243 = vsel %vm242, %v239, %v241
    %vm244 = vcmp.eq.f32.partialorder %v239, 0.0
    %v245 = vand.u32 %v239, 2147483648
    %v246 = vsel %vm244, %v245, %v243
    %v247 = vsub.f32 %v246, %v214
    %v248 = vstv %s219
    %v249 = vmul.f32 %v248, %v247
    %v250 = vadd.f32 %v214, %v249
    %s251 = sld [smem:[#allocation2 + $0x2]]
    %s252 = sld [smem:[#allocation2 + $0x82]]
    %s253 = sld [smem:[#allocation2 + $0x102]]
    %s254 = sld [smem:[#allocation2 + $0x182]]
    %s255 = sld [smem:[#allocation2 + $0x202]]
    %v256 = vsub.f32 %v236, %v233
    %v257 = vstv %s251
    %v258 = vmul.f32 %v257, %v57
    %v259 = vadd.f32 %v226, %v258
    %v260 = vstv %s253
    %v261 = vmul.f32 %v260, %v256
    %v262 = vadd.f32 %v259, %v261
    %v263 = vstv %s252
    %v264 = vmul.f32 %v263, %v57
    %v265 = vadd.f32 %v233, %v264
    %s266 = smul.f32 %s253, 2.0
    %v267 = vstv %s266
    %v268 = vmul.f32 %v267, %v256
    %v269 = vadd.f32 %v265, %v268
    %v270 = vstv %s254
    %v271 = vmul.f32 %v270, %v269
    %v272 = vsub.f32 %v236, %v271
    %v273 = vmul.f32 %v269, %v269
    %274 = vadd.xlane.f32.xlu0 %v273
    %v275 = vpop.xlane.xlu0 %274
    %v276 = vrsqrt.pop %v275
    %v277 = vmul.f32 %v275, %v276
    %vm278 = vcmp.eq.f32.partialorder %v275, inf
    %v279 = vsel %vm278, %v275, %v277
    %vm280 = vcmp.eq.f32.partialorder %v275, 0.0
    %v281 = vand.u32 %v275, 2147483648
    %v282 = vsel %vm280, %v281, %v279
    %v283 = vsub.f32 %v282, %v250
    %v284 = vstv %s255
    %v285 = vmul.f32 %v284, %v283
    %v286 = vadd.f32 %v250, %v285
    %v287 = vmul.f32 %v286, %v57
    %s288 = sld [smem:[#allocation4]]
    %s289 = sld [smem:[#allocation4 + $0x1]]
    %s290 = sld [smem:[#allocation4 + $0x2]]
    %s291 = sld [smem:[#allocation4 + $0x3]]
    %s292 = sld [smem:[#allocation4 + $0x4]]
    %s293 = sadd.f32 %s288, %s289
    %v294 = vstv %s293
    %v295 = vmul.f32 %v294, %v262
    %v296 = vstv %s289
    %v297 = vmul.f32 %v296, %v269
    %v298 = vsub.f32 %v295, %v297
    %s299 = ssub.f32 %s290, %s291
    %v300 = vstv %s299
    %v301 = vmul.f32 %v300, %v272
    %v302 = vadd.f32 %v298, %v301
    %v303 = vstv %s292
    %v304 = vmul.f32 %v303, %v287
    %v305 = vadd.f32 %v302, %v304
    %v307 = vcombine.high %v305, %v305
    %v309 = vunpack.c.l.s4 1966171168
    %v310 = vunpack.c.0.s8 %v309
    %v311 = vlaneseq
    %v312 = vshrl.u32 %v311, 7
    %v313 = vsub.s32 %v310, %v312
    %v314 = vrot.slane %v305, %v313
    %v316 = vunpack.c.l.s4 1966171168
    %v317 = vunpack.c.0.s8 %v316
    %v318 = vlaneseq
    %v319 = vshrl.u32 %v318, 7
    %v320 = vsub.s32 %v317, %v319
    %v321 = vrot.slane %v307, %v320
    %v322 = vcombine.high %v314, %v314
    %v323 = vcombine.high %v321, %v321
    %v325 = vunpack.c.l.s4 1966171168
    %v326 = vunpack.c.0.s8 %v325
    %v327 = vlaneseq
    %v328 = vshrl.u32 %v327, 7
    %v329 = vsub.s32 %v326, %v328
    %v330 = vrot.slane %v314, %v329
    %v332 = vunpack.c.l.s4 1966171168
    %v333 = vunpack.c.0.s8 %v332
    %v334 = vlaneseq
    %v335 = vshrl.u32 %v334, 7
    %v336 = vsub.s32 %v333, %v335
    %v337 = vrot.slane %v321, %v336
    %v339 = vunpack.c.l.s4 1966171168
    %v340 = vunpack.c.0.s8 %v339
    %v341 = vlaneseq
    %v342 = vshrl.u32 %v341, 7
    %v343 = vsub.s32 %v340, %v342
    %v344 = vrot.slane %v322, %v343
    %v346 = vunpack.c.l.s4 1966171168
    %v347 = vunpack.c.0.s8 %v346
    %v348 = vlaneseq
    %v349 = vshrl.u32 %v348, 7
    %v350 = vsub.s32 %v347, %v349
    %v351 = vrot.slane %v323, %v350
    %v352 = vcombine.high %v330, %v330
    %v353 = vcombine.high %v337, %v337
    %v354 = vcombine.high %v344, %v344
    %v355 = vcombine.high %v351, %v351
    %364 = vst [vmem:[%s8] sm:$0x1] %v330
    %365 = vst [vmem:[%s8 + $0x8] sm:$0x1] %v344
    %366 = vst [vmem:[%s8 + $0x10] sm:$0x1] %v352
    %367 = vst [vmem:[%s8 + $0x18] sm:$0x1] %v354
    %368 = vst [vmem:[%s8 + $0x20] sm:$0x1] %v337
    %369 = vst [vmem:[%s8 + $0x28] sm:$0x1] %v351
    %370 = vst [vmem:[%s8 + $0x30] sm:$0x1] %v353
    %371 = vst [vmem:[%s8 + $0x38] sm:$0x1] %v355
    %s372 = sld [smem:[#allocation4 + $0x80]]
    %s373 = sld [smem:[#allocation4 + $0x81]]
    %s374 = sld [smem:[#allocation4 + $0x82]]
    %s375 = sld [smem:[#allocation4 + $0x83]]
    %s376 = sld [smem:[#allocation4 + $0x84]]
    %s377 = sadd.f32 %s372, %s373
    %v378 = vstv %s377
    %v379 = vmul.f32 %v378, %v262
    %v380 = vstv %s373
    %v381 = vmul.f32 %v380, %v269
    %v382 = vsub.f32 %v379, %v381
    %s383 = ssub.f32 %s374, %s375
    %v384 = vstv %s383
    %v385 = vmul.f32 %v384, %v272
    %v386 = vadd.f32 %v382, %v385
    %v387 = vstv %s376
    %v388 = vmul.f32 %v387, %v287
    %v389 = vadd.f32 %v386, %v388
    %v391 = vcombine.high %v389, %v389
    %v393 = vunpack.c.l.s4 1966171168
    %v394 = vunpack.c.0.s8 %v393
    %v395 = vlaneseq
    %v396 = vshrl.u32 %v395, 7
    %v397 = vsub.s32 %v394, %v396
    %v398 = vrot.slane %v389, %v397
    %v400 = vunpack.c.l.s4 1966171168
    %v401 = vunpack.c.0.s8 %v400
    %v402 = vlaneseq
    %v403 = vshrl.u32 %v402, 7
    %v404 = vsub.s32 %v401, %v403
    %v405 = vrot.slane %v391, %v404
    %v406 = vcombine.high %v398, %v398
    %v407 = vcombine.high %v405, %v405
    %v409 = vunpack.c.l.s4 1966171168
    %v410 = vunpack.c.0.s8 %v409
    %v411 = vlaneseq
    %v412 = vshrl.u32 %v411, 7
    %v413 = vsub.s32 %v410, %v412
    %v414 = vrot.slane %v398, %v413
    %v416 = vunpack.c.l.s4 1966171168
    %v417 = vunpack.c.0.s8 %v416
    %v418 = vlaneseq
    %v419 = vshrl.u32 %v418, 7
    %v420 = vsub.s32 %v417, %v419
    %v421 = vrot.slane %v405, %v420
    %v423 = vunpack.c.l.s4 1966171168
    %v424 = vunpack.c.0.s8 %v423
    %v425 = vlaneseq
    %v426 = vshrl.u32 %v425, 7
    %v427 = vsub.s32 %v424, %v426
    %v428 = vrot.slane %v406, %v427
    %v430 = vunpack.c.l.s4 1966171168
    %v431 = vunpack.c.0.s8 %v430
    %v432 = vlaneseq
    %v433 = vshrl.u32 %v432, 7
    %v434 = vsub.s32 %v431, %v433
    %v435 = vrot.slane %v407, %v434
    %v436 = vcombine.high %v414, %v414
    %v437 = vcombine.high %v421, %v421
    %v438 = vcombine.high %v428, %v428
    %v439 = vcombine.high %v435, %v435
    %448 = vst [vmem:[%s8 + $0x1] sm:$0x1] %v414
    %449 = vst [vmem:[%s8 + $0x9] sm:$0x1] %v428
    %450 = vst [vmem:[%s8 + $0x11] sm:$0x1] %v436
    %451 = vst [vmem:[%s8 + $0x19] sm:$0x1] %v438
    %452 = vst [vmem:[%s8 + $0x21] sm:$0x1] %v421
    %453 = vst [vmem:[%s8 + $0x29] sm:$0x1] %v435
    %454 = vst [vmem:[%s8 + $0x31] sm:$0x1] %v437
    %455 = vst [vmem:[%s8 + $0x39] sm:$0x1] %v439
    %s456 = sld [smem:[#allocation4 + $0x100]]
    %s457 = sld [smem:[#allocation4 + $0x101]]
    %s458 = sld [smem:[#allocation4 + $0x102]]
    %s459 = sld [smem:[#allocation4 + $0x103]]
    %s460 = sld [smem:[#allocation4 + $0x104]]
    %s461 = sadd.f32 %s456, %s457
    %v462 = vstv %s461
    %v463 = vmul.f32 %v462, %v262
    %v464 = vstv %s457
    %v465 = vmul.f32 %v464, %v269
    %v466 = vsub.f32 %v463, %v465
    %s467 = ssub.f32 %s458, %s459
    %v468 = vstv %s467
    %v469 = vmul.f32 %v468, %v272
    %v470 = vadd.f32 %v466, %v469
    %v471 = vstv %s460
    %v472 = vmul.f32 %v471, %v287
    %v473 = vadd.f32 %v470, %v472
    %v475 = vcombine.high %v473, %v473
    %v477 = vunpack.c.l.s4 1966171168
    %v478 = vunpack.c.0.s8 %v477
    %v479 = vlaneseq
    %v480 = vshrl.u32 %v479, 7
    %v481 = vsub.s32 %v478, %v480
    %v482 = vrot.slane %v473, %v481
    %v484 = vunpack.c.l.s4 1966171168
    %v485 = vunpack.c.0.s8 %v484
    %v486 = vlaneseq
    %v487 = vshrl.u32 %v486, 7
    %v488 = vsub.s32 %v485, %v487
    %v489 = vrot.slane %v475, %v488
    %v490 = vcombine.high %v482, %v482
    %v491 = vcombine.high %v489, %v489
    %v493 = vunpack.c.l.s4 1966171168
    %v494 = vunpack.c.0.s8 %v493
    %v495 = vlaneseq
    %v496 = vshrl.u32 %v495, 7
    %v497 = vsub.s32 %v494, %v496
    %v498 = vrot.slane %v482, %v497
    %v500 = vunpack.c.l.s4 1966171168
    %v501 = vunpack.c.0.s8 %v500
    %v502 = vlaneseq
    %v503 = vshrl.u32 %v502, 7
    %v504 = vsub.s32 %v501, %v503
    %v505 = vrot.slane %v489, %v504
    %v507 = vunpack.c.l.s4 1966171168
    %v508 = vunpack.c.0.s8 %v507
    %v509 = vlaneseq
    %v510 = vshrl.u32 %v509, 7
    %v511 = vsub.s32 %v508, %v510
    %v512 = vrot.slane %v490, %v511
    %v514 = vunpack.c.l.s4 1966171168
    %v515 = vunpack.c.0.s8 %v514
    %v516 = vlaneseq
    %v517 = vshrl.u32 %v516, 7
    %v518 = vsub.s32 %v515, %v517
    %v519 = vrot.slane %v491, %v518
    %v520 = vcombine.high %v498, %v498
    %v521 = vcombine.high %v505, %v505
    %v522 = vcombine.high %v512, %v512
    %v523 = vcombine.high %v519, %v519
    %532 = vst [vmem:[%s8 + $0x2] sm:$0x1] %v498
    %533 = vst [vmem:[%s8 + $0xa] sm:$0x1] %v512
    %534 = vst [vmem:[%s8 + $0x12] sm:$0x1] %v520
    %535 = vst [vmem:[%s8 + $0x1a] sm:$0x1] %v522
    %536 = vst [vmem:[%s8 + $0x22] sm:$0x1] %v505
    %537 = vst [vmem:[%s8 + $0x2a] sm:$0x1] %v519
    %538 = vst [vmem:[%s8 + $0x32] sm:$0x1] %v521
    %539 = vst [vmem:[%s8 + $0x3a] sm:$0x1] %v523
    %s540 = sld [smem:[#allocation4 + $0x180]]
    %s541 = sld [smem:[#allocation4 + $0x181]]
    %s542 = sld [smem:[#allocation4 + $0x182]]
    %s543 = sld [smem:[#allocation4 + $0x183]]
    %s544 = sld [smem:[#allocation4 + $0x184]]
    %s545 = sadd.f32 %s540, %s541
    %v546 = vstv %s545
    %v547 = vmul.f32 %v546, %v262
    %v548 = vstv %s541
    %v549 = vmul.f32 %v548, %v269
    %v550 = vsub.f32 %v547, %v549
    %s551 = ssub.f32 %s542, %s543
    %v552 = vstv %s551
    %v553 = vmul.f32 %v552, %v272
    %v554 = vadd.f32 %v550, %v553
    %v555 = vstv %s544
    %v556 = vmul.f32 %v555, %v287
    %v557 = vadd.f32 %v554, %v556
    %v559 = vcombine.high %v557, %v557
    %v561 = vunpack.c.l.s4 1966171168
    %v562 = vunpack.c.0.s8 %v561
    %v563 = vlaneseq
    %v564 = vshrl.u32 %v563, 7
    %v565 = vsub.s32 %v562, %v564
    %v566 = vrot.slane %v557, %v565
    %v568 = vunpack.c.l.s4 1966171168
    %v569 = vunpack.c.0.s8 %v568
    %v570 = vlaneseq
    %v571 = vshrl.u32 %v570, 7
    %v572 = vsub.s32 %v569, %v571
    %v573 = vrot.slane %v559, %v572
    %v574 = vcombine.high %v566, %v566
    %v575 = vcombine.high %v573, %v573
    %v577 = vunpack.c.l.s4 1966171168
    %v578 = vunpack.c.0.s8 %v577
    %v579 = vlaneseq
    %v580 = vshrl.u32 %v579, 7
    %v581 = vsub.s32 %v578, %v580
    %v582 = vrot.slane %v566, %v581
    %v584 = vunpack.c.l.s4 1966171168
    %v585 = vunpack.c.0.s8 %v584
    %v586 = vlaneseq
    %v587 = vshrl.u32 %v586, 7
    %v588 = vsub.s32 %v585, %v587
    %v589 = vrot.slane %v573, %v588
    %v591 = vunpack.c.l.s4 1966171168
    %v592 = vunpack.c.0.s8 %v591
    %v593 = vlaneseq
    %v594 = vshrl.u32 %v593, 7
    %v595 = vsub.s32 %v592, %v594
    %v596 = vrot.slane %v574, %v595
    %v598 = vunpack.c.l.s4 1966171168
    %v599 = vunpack.c.0.s8 %v598
    %v600 = vlaneseq
    %v601 = vshrl.u32 %v600, 7
    %v602 = vsub.s32 %v599, %v601
    %v603 = vrot.slane %v575, %v602
    %v604 = vcombine.high %v582, %v582
    %v605 = vcombine.high %v589, %v589
    %v606 = vcombine.high %v596, %v596
    %v607 = vcombine.high %v603, %v603
    %616 = vst [vmem:[%s8 + $0x3] sm:$0x1] %v582
    %617 = vst [vmem:[%s8 + $0xb] sm:$0x1] %v596
    %618 = vst [vmem:[%s8 + $0x13] sm:$0x1] %v604
    %619 = vst [vmem:[%s8 + $0x1b] sm:$0x1] %v606
    %620 = vst [vmem:[%s8 + $0x23] sm:$0x1] %v589
    %621 = vst [vmem:[%s8 + $0x2b] sm:$0x1] %v603
    %622 = vst [vmem:[%s8 + $0x33] sm:$0x1] %v605
    %623 = vst [vmem:[%s8 + $0x3b] sm:$0x1] %v607
    %s624 = sld [smem:[#allocation4 + $0x200]]
    %s625 = sld [smem:[#allocation4 + $0x201]]
    %s626 = sld [smem:[#allocation4 + $0x202]]
    %s627 = sld [smem:[#allocation4 + $0x203]]
    %s628 = sld [smem:[#allocation4 + $0x204]]
    %s629 = sadd.f32 %s624, %s625
    %v630 = vstv %s629
    %v631 = vmul.f32 %v630, %v262
    %v632 = vstv %s625
    %v633 = vmul.f32 %v632, %v269
    %v634 = vsub.f32 %v631, %v633
    %s635 = ssub.f32 %s626, %s627
    %v636 = vstv %s635
    %v637 = vmul.f32 %v636, %v272
    %v638 = vadd.f32 %v634, %v637
    %v639 = vstv %s628
    %v640 = vmul.f32 %v639, %v287
    %v641 = vadd.f32 %v638, %v640
    %v643 = vcombine.high %v641, %v641
    %v645 = vunpack.c.l.s4 1966171168
    %v646 = vunpack.c.0.s8 %v645
    %v647 = vlaneseq
    %v648 = vshrl.u32 %v647, 7
    %v649 = vsub.s32 %v646, %v648
    %v650 = vrot.slane %v641, %v649
    %v652 = vunpack.c.l.s4 1966171168
    %v653 = vunpack.c.0.s8 %v652
    %v654 = vlaneseq
    %v655 = vshrl.u32 %v654, 7
    %v656 = vsub.s32 %v653, %v655
    %v657 = vrot.slane %v643, %v656
    %v658 = vcombine.high %v650, %v650
    %v659 = vcombine.high %v657, %v657
    %v661 = vunpack.c.l.s4 1966171168
    %v662 = vunpack.c.0.s8 %v661
    %v663 = vlaneseq
    %v664 = vshrl.u32 %v663, 7
    %v665 = vsub.s32 %v662, %v664
    %v666 = vrot.slane %v650, %v665
    %v668 = vunpack.c.l.s4 1966171168
    %v669 = vunpack.c.0.s8 %v668
    %v670 = vlaneseq
    %v671 = vshrl.u32 %v670, 7
    %v672 = vsub.s32 %v669, %v671
    %v673 = vrot.slane %v657, %v672
    %v675 = vunpack.c.l.s4 1966171168
    %v676 = vunpack.c.0.s8 %v675
    %v677 = vlaneseq
    %v678 = vshrl.u32 %v677, 7
    %v679 = vsub.s32 %v676, %v678
    %v680 = vrot.slane %v658, %v679
    %v682 = vunpack.c.l.s4 1966171168
    %v683 = vunpack.c.0.s8 %v682
    %v684 = vlaneseq
    %v685 = vshrl.u32 %v684, 7
    %v686 = vsub.s32 %v683, %v685
    %v687 = vrot.slane %v659, %v686
    %v688 = vcombine.high %v666, %v666
    %v689 = vcombine.high %v673, %v673
    %v690 = vcombine.high %v680, %v680
    %v691 = vcombine.high %v687, %v687
    %700 = vst [vmem:[%s8 + $0x4] sm:$0x1] %v666
    %701 = vst [vmem:[%s8 + $0xc] sm:$0x1] %v680
    %702 = vst [vmem:[%s8 + $0x14] sm:$0x1] %v688
    %703 = vst [vmem:[%s8 + $0x1c] sm:$0x1] %v690
    %704 = vst [vmem:[%s8 + $0x24] sm:$0x1] %v673
    %705 = vst [vmem:[%s8 + $0x2c] sm:$0x1] %v687
    %706 = vst [vmem:[%s8 + $0x34] sm:$0x1] %v689
    %707 = vst [vmem:[%s8 + $0x3c] sm:$0x1] %v691
    %v708 = vadd.f32 %v305, %v473
    %v709 = vmul.f32 %v708, 0.5
    %v710 = vadd.f32 %v389, %v557
    %v711 = vmul.f32 %v710, 0.5
    %v712 = vsub.f32 %v709, %v641
    %v713 = vmul.f32 %v712, %v712
    %714 = vadd.xlane.f32.xlu0 %v713
    %v715 = vpop.xlane.xlu0 %714
    %v716 = vsub.f32 %v711, %v641
    %v717 = vmul.f32 %v716, %v716
    %718 = vadd.xlane.f32.xlu0 %v717
    %v719 = vpop.xlane.xlu0 %718
    %vm720 = vcmp.gt.f32.partialorder %v715, %v719
    %v721 = vsel %vm720, 1, 0
    %vm722 = vcmp.eq.s32.totalorder %v721, 1
    %v723 = vsel %vm722, %v709, %v711
    %v724 = vsub.f32 %v723, %v641
    %v725 = vpack.c.bf16 %v724, %v724
    %726 = vst [vmem:[%s7] sm:$0xf] %v725
    // Predicated region
    $region38: #{autonomic_forward.2} parent=1 // pred_check
      _
    $region39: #{autonomic_forward.2} parent=1 // pred_check_branch
      %728 = sbr.rel (0) target = $region41
    $region40: #{autonomic_forward.2} parent=1 // pred_region
      _
    $region41: #{autonomic_forward.2} parent=1 // pred_fallthru
      _
    // Predicated region
    $region42: #{autonomic_forward.2} parent=1 // pred_check
      _
    $region43: #{autonomic_forward.2} parent=1 // pred_check_branch
      %730 = sbr.rel (0) target = $region45
    $region44: #{autonomic_forward.2} parent=1 // pred_region
      _
    $region45: #{autonomic_forward.2} parent=1 // pred_fallthru
      _
    // Predicated region
    $region46: #{autonomic_forward.2} parent=1 // pred_check
      _
    $region47: #{autonomic_forward.2} parent=1 // pred_check_branch
      %732 = sbr.rel (0) target = $region49
    $region48: #{autonomic_forward.2} parent=1 // pred_region
      _
    $region49: #{autonomic_forward.2} parent=1 // pred_fallthru
      _
    // Predicated region
    $region50: #{autonomic_forward.2} parent=1 // pred_check
      _
    $region51: #{autonomic_forward.2} parent=1 // pred_check_branch
      %734 = sbr.rel (0) target = $region53
    $region52: #{autonomic_forward.2} parent=1 // pred_region
      _
    $region53: #{autonomic_forward.2} parent=1 // pred_fallthru
      _
    %735 = vsyncpa [#allocation3], 1
    %736 = vsyncpa [#allocation5], 1

</llo_original>
